<compile_context>
chip_gen: v6e
topology: v6e:2x2x1
jax: 0.10.0
libtpu: 0.0.40
codegen_flags: <defaults>
</compile_context>

<pallas_src>
import jax
import jax.numpy as jnp
from jax.experimental import pallas as pl
from jax.experimental.pallas import tpu as pltpu

H_IN = 14           # conv1 kernel height == input height
W_IN = 1280         # input width; 1280 - 6 = 1274 == fc1.in_features
FC1_IN = 1274
FC1_OUT = 100
FC2_OUT = 50
NUM_CLASSES = 16    # binary=False branch of the module
LANE = 128          # lane-padded hidden width used inside the kernel

# Offsets into the single packed SMEM scalar array holding all conv params.
_C1W, _C2W, _C3W, _C4W, _CB = 0, 14, 17, 20, 23
_NSCAL = 32


def _cnn_kernel(cs_ref, x_ref, w1_ref, b1_ref, w2_ref, b2_ref, w3_ref, b3_ref,
                o_ref):
    # ---- conv1: (14,1) kernel collapses H=14 -> 1 (scalar-weighted row sum).
    # x is H-major, so x_ref[h] is a dense (tb, 1280) tile; upcast bf16->f32 here.
    y = cs_ref[_C1W] * x_ref[0].astype(jnp.float32)
    for h in range(1, H_IN):
        y = y + cs_ref[_C1W + h] * x_ref[h].astype(jnp.float32)
    y = jnp.maximum(y + cs_ref[_CB + 0], 0.0)                   # (tb, 1280) f32

    # ---- conv2/3/4: (1,3) kernels along W.  Lane shifts via XLU rotate
    # (shift W-1 == roll by -1, so z1[:, w] == z[:, (w+1) % W]).
    def conv1x3_relu(z, k_off, b_off):
        z1 = pltpu.roll(z, shift=W_IN - 1, axis=1)
        z2 = pltpu.roll(z, shift=W_IN - 2, axis=1)
        out = (cs_ref[k_off] * z + cs_ref[k_off + 1] * z1
               + cs_ref[k_off + 2] * z2 + cs_ref[b_off])
        return jnp.maximum(out, 0.0)

    y = conv1x3_relu(y, _C2W, _CB + 1)   # valid prefix width 1278
    y = conv1x3_relu(y, _C3W, _CB + 2)   # valid prefix width 1276
    y = conv1x3_relu(y, _C4W, _CB + 3)   # valid prefix width 1274 == fc1.in_features

    # Zero the wrap-around tail lanes (>= FC1_IN) so no garbage / inf*0 -> NaN can
    # reach the fc1 accumulation (belt-and-braces on top of the zero rows in w1).
    lane = jax.lax.broadcasted_iota(jnp.int32, y.shape, 1)
    y = jnp.where(lane < FC1_IN, y, 0.0)

    # ---- fc1 -> relu -> (dropout == identity at inference) -> fc2 -> relu -> out
    # TODO(synk): nn.Dropout(p=0.5) is applied as identity (eval/inference semantics).
    # bf16 MXU inputs with f32 accumulation.
    h1 = jnp.dot(y.astype(jnp.bfloat16), w1_ref[...],
                 preferred_element_type=jnp.float32) + b1_ref[...]
    h1 = jnp.maximum(h1, 0.0)
    h2 = jnp.dot(h1.astype(jnp.bfloat16), w2_ref[...],
                 preferred_element_type=jnp.float32) + b2_ref[...]
    h2 = jnp.maximum(h2, 0.0)
    o_ref[...] = jnp.dot(h2.astype(jnp.bfloat16), w3_ref[...],
                         preferred_element_type=jnp.float32) + b3_ref[...]


def _pad2(w, rows, cols, dtype):
    out = jnp.zeros((rows, cols), dtype)
    return out.at[: w.shape[0], : w.shape[1]].set(w.astype(dtype))


def _round_up(n, m):
    return ((n + m - 1) // m) * m


def _ceil_div(a, b):
    return -(-a // b)


def _pack_conv_scalars(p):
    cs = jnp.zeros((_NSCAL,), jnp.float32)
    cs = cs.at[_C1W:_C1W + H_IN].set(p["c1w"].astype(jnp.float32))
    cs = cs.at[_C2W:_C2W + 3].set(p["c2w"].astype(jnp.float32))
    cs = cs.at[_C3W:_C3W + 3].set(p["c3w"].astype(jnp.float32))
    cs = cs.at[_C4W:_C4W + 3].set(p["c4w"].astype(jnp.float32))
    cs = cs.at[_CB:_CB + 4].set(
        jnp.stack([p["c1b"], p["c2b"], p["c3b"], p["c4b"]]).astype(jnp.float32))
    return cs


def _pick_tiling(B, tb):
    """Batch tile size (multiple of 8) and an even / >=2-step grid when possible
    (v7x megacore: 'parallel' shards batch tiles across the 2 TensorCores)."""
    tbe = min(tb, _round_up(B, 8))
    num_tiles = _ceil_div(B, tbe)
    if num_tiles == 1 and B >= 16:
        num_tiles = 2
        tbe = _round_up(_ceil_div(B, 2), 8)
    elif num_tiles > 1 and num_tiles % 2 == 1:
        num_tiles += 1
        tbe = _round_up(_ceil_div(B, num_tiles), 8)
    return tbe, num_tiles, num_tiles * tbe


def cnn_forward_pallas_hbw(x_hbw, p, *, tb=128):
    """Fast path. x_hbw: (14, B, 1280), f32 or bf16 (bf16 halves the HBM read;
    it is upcast in-kernel, never in the wrapper). Returns (B, 1, 1, NUM_CLASSES).

    Per-generation tb guidance (with vmem_limit_bytes=48 MiB):
      v5e: 64-128   v6e: up to 256   v7x: 128-192 (256 only with bf16 x).
    """
    H, B, W = x_hbw.shape
    assert H == H_IN and W == W_IN, (H, W)

    tbe, num_tiles, b_pad = _pick_tiling(B, tb)
    if b_pad != B:
        x_hbw = jnp.pad(x_hbw, ((0, 0), (0, b_pad - B), (0, 0)))

    cs = _pack_conv_scalars(p)

    # fc weights: transpose, lane-pad to 128, bf16 (MXU-native, half the resident
    # VMEM).  Zero rows 1274..1279 of w1 mask the conv wrap-around tail.
    w1p = _pad2(p["fc1_w"].T, W_IN, LANE, jnp.bfloat16)
    w2p = _pad2(p["fc2_w"].T, LANE, LANE, jnp.bfloat16)
    w3p = _pad2(p["out_w"].T, LANE, LANE, jnp.bfloat16)
    b1p = _pad2(p["fc1_b"][None, :], 1, LANE, jnp.float32)
    b2p = _pad2(p["fc2_b"][None, :], 1, LANE, jnp.float32)
    b3p = _pad2(p["out_b"][None, :], 1, LANE, jnp.float32)

    const2 = lambda i: (0, 0)   # weights/biases stay VMEM-resident across tiles

    out = pl.pallas_call(
        _cnn_kernel,
        out_shape=jax.ShapeDtypeStruct((b_pad, LANE), jnp.float32),
        grid=(num_tiles,),
        in_specs=[
            pl.BlockSpec(memory_space=pltpu.MemorySpace.SMEM),        # packed conv scalars
            pl.BlockSpec((H_IN, tbe, W_IN), lambda i: (0, i, 0)),     # x tile (H-major)
            pl.BlockSpec((W_IN, LANE), const2),                       # fc1 weights
            pl.BlockSpec((1, LANE), const2),                          # fc1 bias
            pl.BlockSpec((LANE, LANE), const2),                       # fc2 weights
            pl.BlockSpec((1, LANE), const2),                          # fc2 bias
            pl.BlockSpec((LANE, LANE), const2),                       # out weights
            pl.BlockSpec((1, LANE), const2),                          # out bias
        ],
        out_specs=pl.BlockSpec((tbe, LANE), lambda i: (i, 0)),        # lane-dense output
        compiler_params=pltpu.CompilerParams(
            dimension_semantics=("parallel",),
            vmem_limit_bytes=48 << 20),
    )(cs, x_hbw, w1p, b1p, w2p, b2p, w3p, b3p)

    return out[:B, :NUM_CLASSES].reshape(B, 1, 1, NUM_CLASSES)


def cnn_forward_pallas(x, p, *, tb=128):
    """PyTorch-layout entry. x: (B, 1, 14, 1280), f32 or bf16 (no cast added here).
    Does the one-time NCHW -> H-major layout transpose; producers that can feed
    (14, B, 1280) bf16 directly should call cnn_forward_pallas_hbw and skip it."""
    B = x.shape[0]
    x_hbw = jnp.transpose(x.reshape(B, H_IN, W_IN), (1, 0, 2))
    return cnn_forward_pallas_hbw(x_hbw, p, tb=tb)


def cnn_forward_reference(x, p):
    """Pure-JAX f32 reference mirroring the PyTorch forward (dropout = identity).
    x: (B, 1, 14, 1280)."""
    B = x.shape[0]
    t = x[:, 0].astype(jnp.float32)                    # (B, 14, 1280)
    y = jnp.einsum("bhw,h->bw", t, p["c1w"]) + p["c1b"]
    y = jax.nn.relu(y)
    for kw, kb in ((p["c2w"], p["c2b"]), (p["c3w"], p["c3b"]), (p["c4w"], p["c4b"])):
        y = kw[0] * y[:, :-2] + kw[1] * y[:, 1:-1] + kw[2] * y[:, 2:] + kb
        y = jax.nn.relu(y)
    h = jax.nn.relu(y @ p["fc1_w"].T + p["fc1_b"])
    h = jax.nn.relu(h @ p["fc2_w"].T + p["fc2_b"])
    o = h @ p["out_w"].T + p["out_b"]
    return o.reshape(B, 1, 1, NUM_CLASSES)


def init_params(key):
    """Deterministic PyTorch-style uniform(-1/sqrt(fan_in), 1/sqrt(fan_in)) init."""
    ks = jax.random.split(key, 14)

    def uni(k, shape, fan_in):
        b = 1.0 / jnp.sqrt(jnp.float32(fan_in))
        return jax.random.uniform(k, shape, jnp.float32, -b, b)

    return {
        "c1w": uni(ks[0], (H_IN,), H_IN), "c1b": uni(ks[1], (), H_IN),
        "c2w": uni(ks[2], (3,), 3),       "c2b": uni(ks[3], (), 3),
        "c3w": uni(ks[4], (3,), 3),       "c3b": uni(ks[5], (), 3),
        "c4w": uni(ks[6], (3,), 3),       "c4b": uni(ks[7], (), 3),
        "fc1_w": uni(ks[8], (FC1_OUT, FC1_IN), FC1_IN),
        "fc1_b": uni(ks[9], (FC1_OUT,), FC1_IN),
        "fc2_w": uni(ks[10], (FC2_OUT, FC1_OUT), FC1_OUT),
        "fc2_b": uni(ks[11], (FC2_OUT,), FC1_OUT),
        "out_w": uni(ks[12], (NUM_CLASSES, FC2_OUT), FC2_OUT),
        "out_b": uni(ks[13], (NUM_CLASSES,), FC2_OUT),
    }


if __name__ == "__main__":
    key = jax.random.PRNGKey(0)
    pkey, xkey = jax.random.split(key)
    params = init_params(pkey)

    B = 2
    # Producer-side: emit bf16 activations already in H-major (14, B, 1280) layout
    # (halves the dominant HBM read; dense (8,128) tiles per conv1 row slice).
    x_hbw = jax.random.normal(xkey, (H_IN, B, W_IN), jnp.float32).astype(jnp.bfloat16)

    fwd = jax.jit(cnn_forward_pallas_hbw)      # folds weight padding/packing per compile
    out = jax.block_until_ready(fwd(x_hbw, params))

    # Reference (f32 math) on the exact same bf16 sample values, PyTorch NCHW layout.
    x_nchw_f32 = jnp.transpose(x_hbw.astype(jnp.float32), (1, 0, 2)).reshape(
        B, 1, H_IN, W_IN)
    ref = jax.block_until_ready(cnn_forward_reference(x_nchw_f32, params))

    # Also exercise the PyTorch-layout (NCHW) entry point.
    out_nchw = jax.block_until_ready(
        jax.jit(cnn_forward_pallas)(x_nchw_f32.astype(jnp.bfloat16), params))

    assert out.shape == (B, 1, 1, NUM_CLASSES), out.shape
    max_err = float(jnp.max(jnp.abs(out - ref)))
    # Tolerance reflects bf16 MXU inputs (f32 accumulation) vs the f32 reference.
    assert jnp.allclose(out, ref, rtol=2e-2, atol=1e-2), f"max_err={max_err}"
    assert jnp.allclose(out_nchw, ref, rtol=2e-2, atol=1e-2)
    print("KERNEL_OK")
</pallas_src>

<mosaic_0001>
module attributes {stable_mosaic.version = 11 : i64} {
  func.func @_cnn_kernel(%arg0: i32, %arg1: memref<32xf32, #tpu.memory_space<smem>>, %arg2: memref<14x8x1280xbf16, #tpu.memory_space<vmem>>, %arg3: memref<1280x128xbf16, #tpu.memory_space<vmem>>, %arg4: memref<1x128xf32, #tpu.memory_space<vmem>>, %arg5: memref<128x128xbf16, #tpu.memory_space<vmem>>, %arg6: memref<1x128xf32, #tpu.memory_space<vmem>>, %arg7: memref<128x128xbf16, #tpu.memory_space<vmem>>, %arg8: memref<1x128xf32, #tpu.memory_space<vmem>>, %arg9: memref<8x128xf32, #tpu.memory_space<vmem>>) attributes {dimension_semantics = [#tpu.dimension_semantics<parallel>], iteration_bounds = array<i64: 1>, scalar_prefetch = 0 : i64, scratch_operands = 0 : i64, tpu.core_type = #tpu.core_type<tc>, window_params = [{transform_indices = @transform_0, window_bounds = array<i64: 32>}, {transform_indices = @transform_1, window_bounds = array<i64: 14, 8, 1280>}, {pipeline_mode = #tpu.pipeline_mode<synchronous>, transform_indices = @transform_2, window_bounds = array<i64: 1280, 128>}, {pipeline_mode = #tpu.pipeline_mode<synchronous>, transform_indices = @transform_3, window_bounds = array<i64: 1, 128>}, {pipeline_mode = #tpu.pipeline_mode<synchronous>, transform_indices = @transform_4, window_bounds = array<i64: 128, 128>}, {pipeline_mode = #tpu.pipeline_mode<synchronous>, transform_indices = @transform_5, window_bounds = array<i64: 1, 128>}, {pipeline_mode = #tpu.pipeline_mode<synchronous>, transform_indices = @transform_6, window_bounds = array<i64: 128, 128>}, {pipeline_mode = #tpu.pipeline_mode<synchronous>, transform_indices = @transform_7, window_bounds = array<i64: 1, 128>}, {transform_indices = @transform_8, window_bounds = array<i64: 8, 128>}]} {
    %c0 = arith.constant 0 : index
    %0 = memref.load %arg1[%c0] : memref<32xf32, #tpu.memory_space<smem>>
    %c0_0 = arith.constant 0 : index
    %c0_1 = arith.constant 0 : index
    %c0_2 = arith.constant 0 : index
    %1 = vector.load %arg2[%c0_0, %c0_1, %c0_2] : memref<14x8x1280xbf16, #tpu.memory_space<vmem>>, vector<1x8x1280xbf16>
    %2 = vector.shape_cast %1 : vector<1x8x1280xbf16> to vector<8x1280xbf16>
    %3 = arith.extf %2 : vector<8x1280xbf16> to vector<8x1280xf32>
    %4 = vector.broadcast %0 : f32 to vector<8x1280xf32>
    %5 = arith.mulf %4, %3 : vector<8x1280xf32>
    %c1 = arith.constant 1 : index
    %6 = memref.load %arg1[%c1] : memref<32xf32, #tpu.memory_space<smem>>
    %c1_3 = arith.constant 1 : index
    %c0_4 = arith.constant 0 : index
    %c0_5 = arith.constant 0 : index
    %7 = vector.load %arg2[%c1_3, %c0_4, %c0_5] : memref<14x8x1280xbf16, #tpu.memory_space<vmem>>, vector<1x8x1280xbf16>
    %8 = vector.shape_cast %7 : vector<1x8x1280xbf16> to vector<8x1280xbf16>
    %9 = arith.extf %8 : vector<8x1280xbf16> to vector<8x1280xf32>
    %10 = vector.broadcast %6 : f32 to vector<8x1280xf32>
    %11 = arith.mulf %10, %9 : vector<8x1280xf32>
    %12 = arith.addf %5, %11 : vector<8x1280xf32>
    %c2 = arith.constant 2 : index
    %13 = memref.load %arg1[%c2] : memref<32xf32, #tpu.memory_space<smem>>
    %c2_6 = arith.constant 2 : index
    %c0_7 = arith.constant 0 : index
    %c0_8 = arith.constant 0 : index
    %14 = vector.load %arg2[%c2_6, %c0_7, %c0_8] : memref<14x8x1280xbf16, #tpu.memory_space<vmem>>, vector<1x8x1280xbf16>
    %15 = vector.shape_cast %14 : vector<1x8x1280xbf16> to vector<8x1280xbf16>
    %16 = arith.extf %15 : vector<8x1280xbf16> to vector<8x1280xf32>
    %17 = vector.broadcast %13 : f32 to vector<8x1280xf32>
    %18 = arith.mulf %17, %16 : vector<8x1280xf32>
    %19 = arith.addf %12, %18 : vector<8x1280xf32>
    %c3 = arith.constant 3 : index
    %20 = memref.load %arg1[%c3] : memref<32xf32, #tpu.memory_space<smem>>
    %c3_9 = arith.constant 3 : index
    %c0_10 = arith.constant 0 : index
    %c0_11 = arith.constant 0 : index
    %21 = vector.load %arg2[%c3_9, %c0_10, %c0_11] : memref<14x8x1280xbf16, #tpu.memory_space<vmem>>, vector<1x8x1280xbf16>
    %22 = vector.shape_cast %21 : vector<1x8x1280xbf16> to vector<8x1280xbf16>
    %23 = arith.extf %22 : vector<8x1280xbf16> to vector<8x1280xf32>
    %24 = vector.broadcast %20 : f32 to vector<8x1280xf32>
    %25 = arith.mulf %24, %23 : vector<8x1280xf32>
    %26 = arith.addf %19, %25 : vector<8x1280xf32>
    %c4 = arith.constant 4 : index
    %27 = memref.load %arg1[%c4] : memref<32xf32, #tpu.memory_space<smem>>
    %c4_12 = arith.constant 4 : index
    %c0_13 = arith.constant 0 : index
    %c0_14 = arith.constant 0 : index
    %28 = vector.load %arg2[%c4_12, %c0_13, %c0_14] : memref<14x8x1280xbf16, #tpu.memory_space<vmem>>, vector<1x8x1280xbf16>
    %29 = vector.shape_cast %28 : vector<1x8x1280xbf16> to vector<8x1280xbf16>
    %30 = arith.extf %29 : vector<8x1280xbf16> to vector<8x1280xf32>
    %31 = vector.broadcast %27 : f32 to vector<8x1280xf32>
    %32 = arith.mulf %31, %30 : vector<8x1280xf32>
    %33 = arith.addf %26, %32 : vector<8x1280xf32>
    %c5 = arith.constant 5 : index
    %34 = memref.load %arg1[%c5] : memref<32xf32, #tpu.memory_space<smem>>
    %c5_15 = arith.constant 5 : index
    %c0_16 = arith.constant 0 : index
    %c0_17 = arith.constant 0 : index
    %35 = vector.load %arg2[%c5_15, %c0_16, %c0_17] : memref<14x8x1280xbf16, #tpu.memory_space<vmem>>, vector<1x8x1280xbf16>
    %36 = vector.shape_cast %35 : vector<1x8x1280xbf16> to vector<8x1280xbf16>
    %37 = arith.extf %36 : vector<8x1280xbf16> to vector<8x1280xf32>
    %38 = vector.broadcast %34 : f32 to vector<8x1280xf32>
    %39 = arith.mulf %38, %37 : vector<8x1280xf32>
    %40 = arith.addf %33, %39 : vector<8x1280xf32>
    %c6 = arith.constant 6 : index
    %41 = memref.load %arg1[%c6] : memref<32xf32, #tpu.memory_space<smem>>
    %c6_18 = arith.constant 6 : index
    %c0_19 = arith.constant 0 : index
    %c0_20 = arith.constant 0 : index
    %42 = vector.load %arg2[%c6_18, %c0_19, %c0_20] : memref<14x8x1280xbf16, #tpu.memory_space<vmem>>, vector<1x8x1280xbf16>
    %43 = vector.shape_cast %42 : vector<1x8x1280xbf16> to vector<8x1280xbf16>
    %44 = arith.extf %43 : vector<8x1280xbf16> to vector<8x1280xf32>
    %45 = vector.broadcast %41 : f32 to vector<8x1280xf32>
    %46 = arith.mulf %45, %44 : vector<8x1280xf32>
    %47 = arith.addf %40, %46 : vector<8x1280xf32>
    %c7 = arith.constant 7 : index
    %48 = memref.load %arg1[%c7] : memref<32xf32, #tpu.memory_space<smem>>
    %c7_21 = arith.constant 7 : index
    %c0_22 = arith.constant 0 : index
    %c0_23 = arith.constant 0 : index
    %49 = vector.load %arg2[%c7_21, %c0_22, %c0_23] : memref<14x8x1280xbf16, #tpu.memory_space<vmem>>, vector<1x8x1280xbf16>
    %50 = vector.shape_cast %49 : vector<1x8x1280xbf16> to vector<8x1280xbf16>
    %51 = arith.extf %50 : vector<8x1280xbf16> to vector<8x1280xf32>
    %52 = vector.broadcast %48 : f32 to vector<8x1280xf32>
    %53 = arith.mulf %52, %51 : vector<8x1280xf32>
    %54 = arith.addf %47, %53 : vector<8x1280xf32>
    %c8 = arith.constant 8 : index
    %55 = memref.load %arg1[%c8] : memref<32xf32, #tpu.memory_space<smem>>
    %c8_24 = arith.constant 8 : index
    %c0_25 = arith.constant 0 : index
    %c0_26 = arith.constant 0 : index
    %56 = vector.load %arg2[%c8_24, %c0_25, %c0_26] : memref<14x8x1280xbf16, #tpu.memory_space<vmem>>, vector<1x8x1280xbf16>
    %57 = vector.shape_cast %56 : vector<1x8x1280xbf16> to vector<8x1280xbf16>
    %58 = arith.extf %57 : vector<8x1280xbf16> to vector<8x1280xf32>
    %59 = vector.broadcast %55 : f32 to vector<8x1280xf32>
    %60 = arith.mulf %59, %58 : vector<8x1280xf32>
    %61 = arith.addf %54, %60 : vector<8x1280xf32>
    %c9 = arith.constant 9 : index
    %62 = memref.load %arg1[%c9] : memref<32xf32, #tpu.memory_space<smem>>
    %c9_27 = arith.constant 9 : index
    %c0_28 = arith.constant 0 : index
    %c0_29 = arith.constant 0 : index
    %63 = vector.load %arg2[%c9_27, %c0_28, %c0_29] : memref<14x8x1280xbf16, #tpu.memory_space<vmem>>, vector<1x8x1280xbf16>
    %64 = vector.shape_cast %63 : vector<1x8x1280xbf16> to vector<8x1280xbf16>
    %65 = arith.extf %64 : vector<8x1280xbf16> to vector<8x1280xf32>
    %66 = vector.broadcast %62 : f32 to vector<8x1280xf32>
    %67 = arith.mulf %66, %65 : vector<8x1280xf32>
    %68 = arith.addf %61, %67 : vector<8x1280xf32>
    %c10 = arith.constant 10 : index
    %69 = memref.load %arg1[%c10] : memref<32xf32, #tpu.memory_space<smem>>
    %c10_30 = arith.constant 10 : index
    %c0_31 = arith.constant 0 : index
    %c0_32 = arith.constant 0 : index
    %70 = vector.load %arg2[%c10_30, %c0_31, %c0_32] : memref<14x8x1280xbf16, #tpu.memory_space<vmem>>, vector<1x8x1280xbf16>
    %71 = vector.shape_cast %70 : vector<1x8x1280xbf16> to vector<8x1280xbf16>
    %72 = arith.extf %71 : vector<8x1280xbf16> to vector<8x1280xf32>
    %73 = vector.broadcast %69 : f32 to vector<8x1280xf32>
    %74 = arith.mulf %73, %72 : vector<8x1280xf32>
    %75 = arith.addf %68, %74 : vector<8x1280xf32>
    %c11 = arith.constant 11 : index
    %76 = memref.load %arg1[%c11] : memref<32xf32, #tpu.memory_space<smem>>
    %c11_33 = arith.constant 11 : index
    %c0_34 = arith.constant 0 : index
    %c0_35 = arith.constant 0 : index
    %77 = vector.load %arg2[%c11_33, %c0_34, %c0_35] : memref<14x8x1280xbf16, #tpu.memory_space<vmem>>, vector<1x8x1280xbf16>
    %78 = vector.shape_cast %77 : vector<1x8x1280xbf16> to vector<8x1280xbf16>
    %79 = arith.extf %78 : vector<8x1280xbf16> to vector<8x1280xf32>
    %80 = vector.broadcast %76 : f32 to vector<8x1280xf32>
    %81 = arith.mulf %80, %79 : vector<8x1280xf32>
    %82 = arith.addf %75, %81 : vector<8x1280xf32>
    %c12 = arith.constant 12 : index
    %83 = memref.load %arg1[%c12] : memref<32xf32, #tpu.memory_space<smem>>
    %c12_36 = arith.constant 12 : index
    %c0_37 = arith.constant 0 : index
    %c0_38 = arith.constant 0 : index
    %84 = vector.load %arg2[%c12_36, %c0_37, %c0_38] : memref<14x8x1280xbf16, #tpu.memory_space<vmem>>, vector<1x8x1280xbf16>
    %85 = vector.shape_cast %84 : vector<1x8x1280xbf16> to vector<8x1280xbf16>
    %86 = arith.extf %85 : vector<8x1280xbf16> to vector<8x1280xf32>
    %87 = vector.broadcast %83 : f32 to vector<8x1280xf32>
    %88 = arith.mulf %87, %86 : vector<8x1280xf32>
    %89 = arith.addf %82, %88 : vector<8x1280xf32>
    %c13 = arith.constant 13 : index
    %90 = memref.load %arg1[%c13] : memref<32xf32, #tpu.memory_space<smem>>
    %c13_39 = arith.constant 13 : index
    %c0_40 = arith.constant 0 : index
    %c0_41 = arith.constant 0 : index
    %91 = vector.load %arg2[%c13_39, %c0_40, %c0_41] : memref<14x8x1280xbf16, #tpu.memory_space<vmem>>, vector<1x8x1280xbf16>
    %92 = vector.shape_cast %91 : vector<1x8x1280xbf16> to vector<8x1280xbf16>
    %93 = arith.extf %92 : vector<8x1280xbf16> to vector<8x1280xf32>
    %94 = vector.broadcast %90 : f32 to vector<8x1280xf32>
    %95 = arith.mulf %94, %93 : vector<8x1280xf32>
    %96 = arith.addf %89, %95 : vector<8x1280xf32>
    %c23 = arith.constant 23 : index
    %97 = memref.load %arg1[%c23] : memref<32xf32, #tpu.memory_space<smem>>
    %98 = vector.broadcast %97 : f32 to vector<8x1280xf32>
    %99 = arith.addf %96, %98 : vector<8x1280xf32>
    %cst = arith.constant 0.000000e+00 : f32
    %100 = vector.broadcast %cst : f32 to vector<8x1280xf32>
    %101 = arith.maximumf %99, %100 : vector<8x1280xf32>
    %c1279_i32 = arith.constant 1279 : i32
    %102 = tpu.dynamic_rotate %101 by %c1279_i32 dim 1 : vector<8x1280xf32>, i32 -> vector<8x1280xf32>
    %c1278_i32 = arith.constant 1278 : i32
    %103 = tpu.dynamic_rotate %101 by %c1278_i32 dim 1 : vector<8x1280xf32>, i32 -> vector<8x1280xf32>
    %c14 = arith.constant 14 : index
    %104 = memref.load %arg1[%c14] : memref<32xf32, #tpu.memory_space<smem>>
    %105 = vector.broadcast %104 : f32 to vector<8x1280xf32>
    %106 = arith.mulf %105, %101 : vector<8x1280xf32>
    %c15 = arith.constant 15 : index
    %107 = memref.load %arg1[%c15] : memref<32xf32, #tpu.memory_space<smem>>
    %108 = vector.broadcast %107 : f32 to vector<8x1280xf32>
    %109 = arith.mulf %108, %102 : vector<8x1280xf32>
    %110 = arith.addf %106, %109 : vector<8x1280xf32>
    %c16 = arith.constant 16 : index
    %111 = memref.load %arg1[%c16] : memref<32xf32, #tpu.memory_space<smem>>
    %112 = vector.broadcast %111 : f32 to vector<8x1280xf32>
    %113 = arith.mulf %112, %103 : vector<8x1280xf32>
    %114 = arith.addf %110, %113 : vector<8x1280xf32>
    %c24 = arith.constant 24 : index
    %115 = memref.load %arg1[%c24] : memref<32xf32, #tpu.memory_space<smem>>
    %116 = vector.broadcast %115 : f32 to vector<8x1280xf32>
    %117 = arith.addf %114, %116 : vector<8x1280xf32>
    %cst_42 = arith.constant 0.000000e+00 : f32
    %118 = vector.broadcast %cst_42 : f32 to vector<8x1280xf32>
    %119 = arith.maximumf %117, %118 : vector<8x1280xf32>
    %c1279_i32_43 = arith.constant 1279 : i32
    %120 = tpu.dynamic_rotate %119 by %c1279_i32_43 dim 1 : vector<8x1280xf32>, i32 -> vector<8x1280xf32>
    %c1278_i32_44 = arith.constant 1278 : i32
    %121 = tpu.dynamic_rotate %119 by %c1278_i32_44 dim 1 : vector<8x1280xf32>, i32 -> vector<8x1280xf32>
    %c17 = arith.constant 17 : index
    %122 = memref.load %arg1[%c17] : memref<32xf32, #tpu.memory_space<smem>>
    %123 = vector.broadcast %122 : f32 to vector<8x1280xf32>
    %124 = arith.mulf %123, %119 : vector<8x1280xf32>
    %c18 = arith.constant 18 : index
    %125 = memref.load %arg1[%c18] : memref<32xf32, #tpu.memory_space<smem>>
    %126 = vector.broadcast %125 : f32 to vector<8x1280xf32>
    %127 = arith.mulf %126, %120 : vector<8x1280xf32>
    %128 = arith.addf %124, %127 : vector<8x1280xf32>
    %c19 = arith.constant 19 : index
    %129 = memref.load %arg1[%c19] : memref<32xf32, #tpu.memory_space<smem>>
    %130 = vector.broadcast %129 : f32 to vector<8x1280xf32>
    %131 = arith.mulf %130, %121 : vector<8x1280xf32>
    %132 = arith.addf %128, %131 : vector<8x1280xf32>
    %c25 = arith.constant 25 : index
    %133 = memref.load %arg1[%c25] : memref<32xf32, #tpu.memory_space<smem>>
    %134 = vector.broadcast %133 : f32 to vector<8x1280xf32>
    %135 = arith.addf %132, %134 : vector<8x1280xf32>
    %cst_45 = arith.constant 0.000000e+00 : f32
    %136 = vector.broadcast %cst_45 : f32 to vector<8x1280xf32>
    %137 = arith.maximumf %135, %136 : vector<8x1280xf32>
    %c1279_i32_46 = arith.constant 1279 : i32
    %138 = tpu.dynamic_rotate %137 by %c1279_i32_46 dim 1 : vector<8x1280xf32>, i32 -> vector<8x1280xf32>
    %c1278_i32_47 = arith.constant 1278 : i32
    %139 = tpu.dynamic_rotate %137 by %c1278_i32_47 dim 1 : vector<8x1280xf32>, i32 -> vector<8x1280xf32>
    %c20 = arith.constant 20 : index
    %140 = memref.load %arg1[%c20] : memref<32xf32, #tpu.memory_space<smem>>
    %141 = vector.broadcast %140 : f32 to vector<8x1280xf32>
    %142 = arith.mulf %141, %137 : vector<8x1280xf32>
    %c21 = arith.constant 21 : index
    %143 = memref.load %arg1[%c21] : memref<32xf32, #tpu.memory_space<smem>>
    %144 = vector.broadcast %143 : f32 to vector<8x1280xf32>
    %145 = arith.mulf %144, %138 : vector<8x1280xf32>
    %146 = arith.addf %142, %145 : vector<8x1280xf32>
    %c22 = arith.constant 22 : index
    %147 = memref.load %arg1[%c22] : memref<32xf32, #tpu.memory_space<smem>>
    %148 = vector.broadcast %147 : f32 to vector<8x1280xf32>
    %149 = arith.mulf %148, %139 : vector<8x1280xf32>
    %150 = arith.addf %146, %149 : vector<8x1280xf32>
    %c26 = arith.constant 26 : index
    %151 = memref.load %arg1[%c26] : memref<32xf32, #tpu.memory_space<smem>>
    %152 = vector.broadcast %151 : f32 to vector<8x1280xf32>
    %153 = arith.addf %150, %152 : vector<8x1280xf32>
    %cst_48 = arith.constant 0.000000e+00 : f32
    %154 = vector.broadcast %cst_48 : f32 to vector<8x1280xf32>
    %155 = arith.maximumf %153, %154 : vector<8x1280xf32>
    %156 = tpu.iota {dimensions = array<i32: 1>} : vector<8x1280xi32>
    %c1274_i32 = arith.constant 1274 : i32
    %157 = vector.broadcast %c1274_i32 : i32 to vector<8x1280xi32>
    %158 = arith.cmpi slt, %156, %157 : vector<8x1280xi32>
    %cst_49 = arith.constant 0.000000e+00 : f32
    %159 = vector.broadcast %cst_49 : f32 to vector<8x1280xf32>
    %160 = arith.select %158, %155, %159 : vector<8x1280xi1>, vector<8x1280xf32>
    %161 = arith.truncf %160 : vector<8x1280xf32> to vector<8x1280xbf16>
    %c0_50 = arith.constant 0 : index
    %c0_51 = arith.constant 0 : index
    %162 = vector.load %arg3[%c0_50, %c0_51] : memref<1280x128xbf16, #tpu.memory_space<vmem>>, vector<1280x128xbf16>
    %cst_52 = arith.constant dense<0.000000e+00> : vector<8x128xf32>
    %163 = tpu.matmul %161, %162, %cst_52 {dimension_numbers = #tpu.dot_dimension_numbers<[1], [0], [0], [1], [0, 0, 1, 1], [], []>} : vector<8x1280xbf16>, vector<1280x128xbf16>, vector<8x128xf32> -> vector<8x128xf32>
    %c0_53 = arith.constant 0 : index
    %c0_54 = arith.constant 0 : index
    %164 = vector.load %arg4[%c0_53, %c0_54] : memref<1x128xf32, #tpu.memory_space<vmem>>, vector<1x128xf32>
    %165 = vector.broadcast %164 : vector<1x128xf32> to vector<8x128xf32>
    %166 = arith.addf %163, %165 : vector<8x128xf32>
    %cst_55 = arith.constant 0.000000e+00 : f32
    %167 = vector.broadcast %cst_55 : f32 to vector<8x128xf32>
    %168 = arith.maximumf %166, %167 : vector<8x128xf32>
    %169 = arith.truncf %168 : vector<8x128xf32> to vector<8x128xbf16>
    %c0_56 = arith.constant 0 : index
    %c0_57 = arith.constant 0 : index
    %170 = vector.load %arg5[%c0_56, %c0_57] : memref<128x128xbf16, #tpu.memory_space<vmem>>, vector<128x128xbf16>
    %cst_58 = arith.constant dense<0.000000e+00> : vector<8x128xf32>
    %171 = tpu.matmul %169, %170, %cst_58 {dimension_numbers = #tpu.dot_dimension_numbers<[1], [0], [0], [1], [0, 0, 1, 1], [], []>} : vector<8x128xbf16>, vector<128x128xbf16>, vector<8x128xf32> -> vector<8x128xf32>
    %c0_59 = arith.constant 0 : index
    %c0_60 = arith.constant 0 : index
    %172 = vector.load %arg6[%c0_59, %c0_60] : memref<1x128xf32, #tpu.memory_space<vmem>>, vector<1x128xf32>
    %173 = vector.broadcast %172 : vector<1x128xf32> to vector<8x128xf32>
    %174 = arith.addf %171, %173 : vector<8x128xf32>
    %cst_61 = arith.constant 0.000000e+00 : f32
    %175 = vector.broadcast %cst_61 : f32 to vector<8x128xf32>
    %176 = arith.maximumf %174, %175 : vector<8x128xf32>
    %177 = arith.truncf %176 : vector<8x128xf32> to vector<8x128xbf16>
    %c0_62 = arith.constant 0 : index
    %c0_63 = arith.constant 0 : index
    %178 = vector.load %arg7[%c0_62, %c0_63] : memref<128x128xbf16, #tpu.memory_space<vmem>>, vector<128x128xbf16>
    %cst_64 = arith.constant dense<0.000000e+00> : vector<8x128xf32>
    %179 = tpu.matmul %177, %178, %cst_64 {dimension_numbers = #tpu.dot_dimension_numbers<[1], [0], [0], [1], [0, 0, 1, 1], [], []>} : vector<8x128xbf16>, vector<128x128xbf16>, vector<8x128xf32> -> vector<8x128xf32>
    %c0_65 = arith.constant 0 : index
    %c0_66 = arith.constant 0 : index
    %180 = vector.load %arg8[%c0_65, %c0_66] : memref<1x128xf32, #tpu.memory_space<vmem>>, vector<1x128xf32>
    %181 = vector.broadcast %180 : vector<1x128xf32> to vector<8x128xf32>
    %182 = arith.addf %179, %181 : vector<8x128xf32>
    %c0_67 = arith.constant 0 : index
    %c0_68 = arith.constant 0 : index
    %183 = vector.load %arg9[%c0_67, %c0_68] : memref<8x128xf32, #tpu.memory_space<vmem>>, vector<8x128xf32>
    tpu.vector_store %arg9[%c0_67, %c0_68], %182 {strides = array<i32>} : memref<8x128xf32, #tpu.memory_space<vmem>>, vector<8x128xf32>,
    return
  }
  func.func @transform_0(%arg0: i32) -> i32 {
    %c0_i32 = arith.constant 0 : i32
    %c0_i32_0 = arith.constant 0 : i32
    return %c0_i32 : i32
  }
  func.func @transform_1(%arg0: i32) -> (i32, i32, i32) {
    %c0_i32 = arith.constant 0 : i32
    %c0_i32_0 = arith.constant 0 : i32
    %c0_i32_1 = arith.constant 0 : i32
    return %c0_i32, %arg0, %c0_i32_0 : i32, i32, i32
  }
  func.func @transform_2(%arg0: i32) -> (i32, i32) {
    %c0_i32 = arith.constant 0 : i32
    %c0_i32_0 = arith.constant 0 : i32
    %c0_i32_1 = arith.constant 0 : i32
    return %c0_i32, %c0_i32_0 : i32, i32
  }
  func.func @transform_3(%arg0: i32) -> (i32, i32) {
    %c0_i32 = arith.constant 0 : i32
    %c0_i32_0 = arith.constant 0 : i32
    %c0_i32_1 = arith.constant 0 : i32
    return %c0_i32, %c0_i32_0 : i32, i32
  }
  func.func @transform_4(%arg0: i32) -> (i32, i32) {
    %c0_i32 = arith.constant 0 : i32
    %c0_i32_0 = arith.constant 0 : i32
    %c0_i32_1 = arith.constant 0 : i32
    return %c0_i32, %c0_i32_0 : i32, i32
  }
  func.func @transform_5(%arg0: i32) -> (i32, i32) {
    %c0_i32 = arith.constant 0 : i32
    %c0_i32_0 = arith.constant 0 : i32
    %c0_i32_1 = arith.constant 0 : i32
    return %c0_i32, %c0_i32_0 : i32, i32
  }
  func.func @transform_6(%arg0: i32) -> (i32, i32) {
    %c0_i32 = arith.constant 0 : i32
    %c0_i32_0 = arith.constant 0 : i32
    %c0_i32_1 = arith.constant 0 : i32
    return %c0_i32, %c0_i32_0 : i32, i32
  }
  func.func @transform_7(%arg0: i32) -> (i32, i32) {
    %c0_i32 = arith.constant 0 : i32
    %c0_i32_0 = arith.constant 0 : i32
    %c0_i32_1 = arith.constant 0 : i32
    return %c0_i32, %c0_i32_0 : i32, i32
  }
  func.func @transform_8(%arg0: i32) -> (i32, i32) {
    %c0_i32 = arith.constant 0 : i32
    %c0_i32_0 = arith.constant 0 : i32
    return %arg0, %c0_i32 : i32, i32
  }
}

</mosaic_0001>

<llo_original>
// kernel: cnn_forward_pallas_hbw.1
$region0: #{cnn_forward_pallas_hbw.1}
  #allocation0 [shape = 'u32[]', space=smem, size = 0x4, offset = 0x4, fixed_abs, tag = 'smem constant byte address 0x4 - core index']
  #allocation1 [shape = 'u32[144,128]{1,0:T(1,128)}', space=vmem, size = 0x12000, scoped, tag = 'internal scratch']
  %s0 = inlined_call_operand.vmem [shape: f32[32], index: 0, kind: input, shape index: {}]
  %s1 = inlined_call_operand.vmem [shape: bf16[14,8,1280], index: 1, kind: input, shape index: {}]
  %s2 = inlined_call_operand.vmem [shape: bf16[1280,128], index: 2, kind: input, shape index: {}]
  %s3 = inlined_call_operand.vmem [shape: f32[1,128], index: 3, kind: input, shape index: {}]
  %s4 = inlined_call_operand.vmem [shape: bf16[128,128], index: 4, kind: input, shape index: {}]
  %s5 = inlined_call_operand.vmem [shape: f32[1,128], index: 5, kind: input, shape index: {}]
  %s6 = inlined_call_operand.vmem [shape: bf16[128,128], index: 6, kind: input, shape index: {}]
  %s7 = inlined_call_operand.vmem [shape: f32[1,128], index: 7, kind: input, shape index: {}]
  %s8 = inlined_call_operand.vmem [shape: f32[8,128], index: 8, kind: output, shape index: {}]
  %s9 = sld [smem:[#allocation0]]
  $region46: #{cnn_forward_pallas_hbw.1} parent=0
    _
  %s11 = ssub.s32 1, %s9
  %s12 = scalar_select 0, %s11, %s9
  $region1: #{cnn_forward_pallas_hbw.1} parent=0
    #allocation2 [shape = 'u8[512]{0}', space=smem, size = 0x200, scoped, tag = 'input window, operand 0, single buffered']
    #allocation3 [shape = 's32[1]{0}', space=sflag, size = 0x4, scoped, tag = 'scoped memory for cnn_forward_pallas_hbw.1']
    %13 = vsyncpa [#allocation3], 0
    // Predicated region
    $region2: #{cnn_forward_pallas_hbw.1} parent=1 // pred_check
      _
    $region3: #{cnn_forward_pallas_hbw.1} parent=1 // pred_check_branch
      %15 = sbr.rel (0) target = $region5
    $region4: #{cnn_forward_pallas_hbw.1} parent=1 // pred_region
      %s17 = ssub.s32 16, 16
      %18 = vsyncadd [#allocation3], %s17
      %s20 = sshll.u32 %s0, 4
      %s21 = int_to_ptr.vmem [resolvable:$true] %s20
      %23 = dma.vmem_to_smem %s21, 16, [#allocation2], [#allocation3]
    $region5: #{cnn_forward_pallas_hbw.1} parent=1 // pred_fallthru
      _
    // Predicated region
    $region6: #{cnn_forward_pallas_hbw.1} parent=1 // pred_check
      _
    $region7: #{cnn_forward_pallas_hbw.1} parent=1 // pred_check_branch
      %25 = sbr.rel (0) target = $region9
    $region8: #{cnn_forward_pallas_hbw.1} parent=1 // pred_region
      _
    $region9: #{cnn_forward_pallas_hbw.1} parent=1 // pred_fallthru
      _
    // Predicated region
    $region10: #{cnn_forward_pallas_hbw.1} parent=1 // pred_check
      _
    $region11: #{cnn_forward_pallas_hbw.1} parent=1 // pred_check_branch
      %27 = sbr.rel (0) target = $region13
    $region12: #{cnn_forward_pallas_hbw.1} parent=1 // pred_region
      _
    $region13: #{cnn_forward_pallas_hbw.1} parent=1 // pred_fallthru
      _
    // Predicated region
    $region14: #{cnn_forward_pallas_hbw.1} parent=1 // pred_check
      _
    $region15: #{cnn_forward_pallas_hbw.1} parent=1 // pred_check_branch
      %29 = sbr.rel (0) target = $region17
    $region16: #{cnn_forward_pallas_hbw.1} parent=1 // pred_region
      _
    $region17: #{cnn_forward_pallas_hbw.1} parent=1 // pred_fallthru
      _
    // Predicated region
    $region18: #{cnn_forward_pallas_hbw.1} parent=1 // pred_check
      _
    $region19: #{cnn_forward_pallas_hbw.1} parent=1 // pred_check_branch
      %31 = sbr.rel (0) target = $region21
    $region20: #{cnn_forward_pallas_hbw.1} parent=1 // pred_region
      _
    $region21: #{cnn_forward_pallas_hbw.1} parent=1 // pred_fallthru
      _
    // Predicated region
    $region22: #{cnn_forward_pallas_hbw.1} parent=1 // pred_check
      _
    $region23: #{cnn_forward_pallas_hbw.1} parent=1 // pred_check_branch
      %33 = sbr.rel (0) target = $region25
    $region24: #{cnn_forward_pallas_hbw.1} parent=1 // pred_region
      _
    $region25: #{cnn_forward_pallas_hbw.1} parent=1 // pred_fallthru
      _
    // Predicated region
    $region26: #{cnn_forward_pallas_hbw.1} parent=1 // pred_check
      _
    $region27: #{cnn_forward_pallas_hbw.1} parent=1 // pred_check_branch
      %35 = sbr.rel (0) target = $region29
    $region28: #{cnn_forward_pallas_hbw.1} parent=1 // pred_region
      _
    $region29: #{cnn_forward_pallas_hbw.1} parent=1 // pred_fallthru
      _
    // Predicated region
    $region30: #{cnn_forward_pallas_hbw.1} parent=1 // pred_check
      _
    $region31: #{cnn_forward_pallas_hbw.1} parent=1 // pred_check_branch
      %37 = sbr.rel (0) target = $region33
    $region32: #{cnn_forward_pallas_hbw.1} parent=1 // pred_region
      _
    $region33: #{cnn_forward_pallas_hbw.1} parent=1 // pred_fallthru
      _
    // Predicated region
    $region34: #{cnn_forward_pallas_hbw.1} parent=1 // pred_check
      _
    $region35: #{cnn_forward_pallas_hbw.1} parent=1 // pred_check_branch
      %39 = sbr.rel (0) target = $region37
    $region36: #{cnn_forward_pallas_hbw.1} parent=1 // pred_region
      %40 = dma.done [#allocation3], 16
    $region37: #{cnn_forward_pallas_hbw.1} parent=1 // pred_fallthru
      _
    %41 = sfence
    %s43 = sld [smem:[#allocation2]]
    %v44 = vld [vmem:[%s1] sm:$0xff]
    %v45 = vld [vmem:[%s1 + $0x8] sm:$0xff]
    %v46 = vld [vmem:[%s1 + $0x10] sm:$0xff]
    %v47 = vld [vmem:[%s1 + $0x18] sm:$0xff]
    %v48 = vld [vmem:[%s1 + $0x20] sm:$0xff]
    %v49 = vunpack.c.l.bf16 %v44
    %v50 = vunpack.c.h.bf16 %v44
    %v51 = vunpack.c.l.bf16 %v45
    %v52 = vunpack.c.h.bf16 %v45
    %v53 = vunpack.c.l.bf16 %v46
    %v54 = vunpack.c.h.bf16 %v46
    %v55 = vunpack.c.l.bf16 %v47
    %v56 = vunpack.c.h.bf16 %v47
    %v57 = vunpack.c.l.bf16 %v48
    %v58 = vunpack.c.h.bf16 %v48
    %v59 = vstv %s43
    %v60 = vmul.f32 %v59, %v49
    %v61 = vmul.f32 %v59, %v50
    %v62 = vmul.f32 %v59, %v51
    %v63 = vmul.f32 %v59, %v52
    %v64 = vmul.f32 %v59, %v53
    %v65 = vmul.f32 %v59, %v54
    %v66 = vmul.f32 %v59, %v55
    %v67 = vmul.f32 %v59, %v56
    %v68 = vmul.f32 %v59, %v57
    %v69 = vmul.f32 %v59, %v58
    %s70 = sld [smem:[#allocation2 + $0x1]]
    %s71 = scalar_lea.vmem %s1, 40
    %v72 = vld [vmem:[%s71] sm:$0xff]
    %v73 = vld [vmem:[%s71 + $0x8] sm:$0xff]
    %v74 = vld [vmem:[%s71 + $0x10] sm:$0xff]
    %v75 = vld [vmem:[%s71 + $0x18] sm:$0xff]
    %v76 = vld [vmem:[%s71 + $0x20] sm:$0xff]
    %v77 = vunpack.c.l.bf16 %v72
    %v78 = vunpack.c.h.bf16 %v72
    %v79 = vunpack.c.l.bf16 %v73
    %v80 = vunpack.c.h.bf16 %v73
    %v81 = vunpack.c.l.bf16 %v74
    %v82 = vunpack.c.h.bf16 %v74
    %v83 = vunpack.c.l.bf16 %v75
    %v84 = vunpack.c.h.bf16 %v75
    %v85 = vunpack.c.l.bf16 %v76
    %v86 = vunpack.c.h.bf16 %v76
    %v87 = vstv %s70
    %v88 = vmul.f32 %v87, %v77
    %v89 = vmul.f32 %v87, %v78
    %v90 = vmul.f32 %v87, %v79
    %v91 = vmul.f32 %v87, %v80
    %v92 = vmul.f32 %v87, %v81
    %v93 = vmul.f32 %v87, %v82
    %v94 = vmul.f32 %v87, %v83
    %v95 = vmul.f32 %v87, %v84
    %v96 = vmul.f32 %v87, %v85
    %v97 = vmul.f32 %v87, %v86
    %v98 = vadd.f32 %v60, %v88
    %v99 = vadd.f32 %v61, %v89
    %v100 = vadd.f32 %v62, %v90
    %v101 = vadd.f32 %v63, %v91
    %v102 = vadd.f32 %v64, %v92
    %v103 = vadd.f32 %v65, %v93
    %v104 = vadd.f32 %v66, %v94
    %v105 = vadd.f32 %v67, %v95
    %v106 = vadd.f32 %v68, %v96
    %v107 = vadd.f32 %v69, %v97
    %s108 = sld [smem:[#allocation2 + $0x2]]
    %s109 = scalar_lea.vmem %s1, 80
    %v110 = vld [vmem:[%s109] sm:$0xff]
    %v111 = vld [vmem:[%s109 + $0x8] sm:$0xff]
    %v112 = vld [vmem:[%s109 + $0x10] sm:$0xff]
    %v113 = vld [vmem:[%s109 + $0x18] sm:$0xff]
    %v114 = vld [vmem:[%s109 + $0x20] sm:$0xff]
    %v115 = vunpack.c.l.bf16 %v110
    %v116 = vunpack.c.h.bf16 %v110
    %v117 = vunpack.c.l.bf16 %v111
    %v118 = vunpack.c.h.bf16 %v111
    %v119 = vunpack.c.l.bf16 %v112
    %v120 = vunpack.c.h.bf16 %v112
    %v121 = vunpack.c.l.bf16 %v113
    %v122 = vunpack.c.h.bf16 %v113
    %v123 = vunpack.c.l.bf16 %v114
    %v124 = vunpack.c.h.bf16 %v114
    %v125 = vstv %s108
    %v126 = vmul.f32 %v125, %v115
    %v127 = vmul.f32 %v125, %v116
    %v128 = vmul.f32 %v125, %v117
    %v129 = vmul.f32 %v125, %v118
    %v130 = vmul.f32 %v125, %v119
    %v131 = vmul.f32 %v125, %v120
    %v132 = vmul.f32 %v125, %v121
    %v133 = vmul.f32 %v125, %v122
    %v134 = vmul.f32 %v125, %v123
    %v135 = vmul.f32 %v125, %v124
    %v136 = vadd.f32 %v98, %v126
    %v137 = vadd.f32 %v99, %v127
    %v138 = vadd.f32 %v100, %v128
    %v139 = vadd.f32 %v101, %v129
    %v140 = vadd.f32 %v102, %v130
    %v141 = vadd.f32 %v103, %v131
    %v142 = vadd.f32 %v104, %v132
    %v143 = vadd.f32 %v105, %v133
    %v144 = vadd.f32 %v106, %v134
    %v145 = vadd.f32 %v107, %v135
    %s146 = sld [smem:[#allocation2 + $0x3]]
    %s147 = scalar_lea.vmem %s1, 120
    %v148 = vld [vmem:[%s147] sm:$0xff]
    %v149 = vld [vmem:[%s147 + $0x8] sm:$0xff]
    %v150 = vld [vmem:[%s147 + $0x10] sm:$0xff]
    %v151 = vld [vmem:[%s147 + $0x18] sm:$0xff]
    %v152 = vld [vmem:[%s147 + $0x20] sm:$0xff]
    %v153 = vunpack.c.l.bf16 %v148
    %v154 = vunpack.c.h.bf16 %v148
    %v155 = vunpack.c.l.bf16 %v149
    %v156 = vunpack.c.h.bf16 %v149
    %v157 = vunpack.c.l.bf16 %v150
    %v158 = vunpack.c.h.bf16 %v150
    %v159 = vunpack.c.l.bf16 %v151
    %v160 = vunpack.c.h.bf16 %v151
    %v161 = vunpack.c.l.bf16 %v152
    %v162 = vunpack.c.h.bf16 %v152
    %v163 = vstv %s146
    %v164 = vmul.f32 %v163, %v153
    %v165 = vmul.f32 %v163, %v154
    %v166 = vmul.f32 %v163, %v155
    %v167 = vmul.f32 %v163, %v156
    %v168 = vmul.f32 %v163, %v157
    %v169 = vmul.f32 %v163, %v158
    %v170 = vmul.f32 %v163, %v159
    %v171 = vmul.f32 %v163, %v160
    %v172 = vmul.f32 %v163, %v161
    %v173 = vmul.f32 %v163, %v162
    %v174 = vadd.f32 %v136, %v164
    %v175 = vadd.f32 %v137, %v165
    %v176 = vadd.f32 %v138, %v166
    %v177 = vadd.f32 %v139, %v167
    %v178 = vadd.f32 %v140, %v168
    %v179 = vadd.f32 %v141, %v169
    %v180 = vadd.f32 %v142, %v170
    %v181 = vadd.f32 %v143, %v171
    %v182 = vadd.f32 %v144, %v172
    %v183 = vadd.f32 %v145, %v173
    %s184 = sld [smem:[#allocation2 + $0x4]]
    %s185 = scalar_lea.vmem %s1, 160
    %v186 = vld [vmem:[%s185] sm:$0xff]
    %v187 = vld [vmem:[%s185 + $0x8] sm:$0xff]
    %v188 = vld [vmem:[%s185 + $0x10] sm:$0xff]
    %v189 = vld [vmem:[%s185 + $0x18] sm:$0xff]
    %v190 = vld [vmem:[%s185 + $0x20] sm:$0xff]
    %v191 = vunpack.c.l.bf16 %v186
    %v192 = vunpack.c.h.bf16 %v186
    %v193 = vunpack.c.l.bf16 %v187
    %v194 = vunpack.c.h.bf16 %v187
    %v195 = vunpack.c.l.bf16 %v188
    %v196 = vunpack.c.h.bf16 %v188
    %v197 = vunpack.c.l.bf16 %v189
    %v198 = vunpack.c.h.bf16 %v189
    %v199 = vunpack.c.l.bf16 %v190
    %v200 = vunpack.c.h.bf16 %v190
    %v201 = vstv %s184
    %v202 = vmul.f32 %v201, %v191
    %v203 = vmul.f32 %v201, %v192
    %v204 = vmul.f32 %v201, %v193
    %v205 = vmul.f32 %v201, %v194
    %v206 = vmul.f32 %v201, %v195
    %v207 = vmul.f32 %v201, %v196
    %v208 = vmul.f32 %v201, %v197
    %v209 = vmul.f32 %v201, %v198
    %v210 = vmul.f32 %v201, %v199
    %v211 = vmul.f32 %v201, %v200
    %v212 = vadd.f32 %v174, %v202
    %v213 = vadd.f32 %v175, %v203
    %v214 = vadd.f32 %v176, %v204
    %v215 = vadd.f32 %v177, %v205
    %v216 = vadd.f32 %v178, %v206
    %v217 = vadd.f32 %v179, %v207
    %v218 = vadd.f32 %v180, %v208
    %v219 = vadd.f32 %v181, %v209
    %v220 = vadd.f32 %v182, %v210
    %v221 = vadd.f32 %v183, %v211
    %s222 = sld [smem:[#allocation2 + $0x5]]
    %s223 = scalar_lea.vmem %s1, 200
    %v224 = vld [vmem:[%s223] sm:$0xff]
    %v225 = vld [vmem:[%s223 + $0x8] sm:$0xff]
    %v226 = vld [vmem:[%s223 + $0x10] sm:$0xff]
    %v227 = vld [vmem:[%s223 + $0x18] sm:$0xff]
    %v228 = vld [vmem:[%s223 + $0x20] sm:$0xff]
    %v229 = vunpack.c.l.bf16 %v224
    %v230 = vunpack.c.h.bf16 %v224
    %v231 = vunpack.c.l.bf16 %v225
    %v232 = vunpack.c.h.bf16 %v225
    %v233 = vunpack.c.l.bf16 %v226
    %v234 = vunpack.c.h.bf16 %v226
    %v235 = vunpack.c.l.bf16 %v227
    %v236 = vunpack.c.h.bf16 %v227
    %v237 = vunpack.c.l.bf16 %v228
    %v238 = vunpack.c.h.bf16 %v228
    %v239 = vstv %s222
    %v240 = vmul.f32 %v239, %v229
    %v241 = vmul.f32 %v239, %v230
    %v242 = vmul.f32 %v239, %v231
    %v243 = vmul.f32 %v239, %v232
    %v244 = vmul.f32 %v239, %v233
    %v245 = vmul.f32 %v239, %v234
    %v246 = vmul.f32 %v239, %v235
    %v247 = vmul.f32 %v239, %v236
    %v248 = vmul.f32 %v239, %v237
    %v249 = vmul.f32 %v239, %v238
    %v250 = vadd.f32 %v212, %v240
    %v251 = vadd.f32 %v213, %v241
    %v252 = vadd.f32 %v214, %v242
    %v253 = vadd.f32 %v215, %v243
    %v254 = vadd.f32 %v216, %v244
    %v255 = vadd.f32 %v217, %v245
    %v256 = vadd.f32 %v218, %v246
    %v257 = vadd.f32 %v219, %v247
    %v258 = vadd.f32 %v220, %v248
    %v259 = vadd.f32 %v221, %v249
    %s260 = sld [smem:[#allocation2 + $0x6]]
    %s261 = scalar_lea.vmem %s1, 240
    %v262 = vld [vmem:[%s261] sm:$0xff]
    %v263 = vld [vmem:[%s261 + $0x8] sm:$0xff]
    %v264 = vld [vmem:[%s261 + $0x10] sm:$0xff]
    %v265 = vld [vmem:[%s261 + $0x18] sm:$0xff]
    %v266 = vld [vmem:[%s261 + $0x20] sm:$0xff]
    %v267 = vunpack.c.l.bf16 %v262
    %v268 = vunpack.c.h.bf16 %v262
    %v269 = vunpack.c.l.bf16 %v263
    %v270 = vunpack.c.h.bf16 %v263
    %v271 = vunpack.c.l.bf16 %v264
    %v272 = vunpack.c.h.bf16 %v264
    %v273 = vunpack.c.l.bf16 %v265
    %v274 = vunpack.c.h.bf16 %v265
    %v275 = vunpack.c.l.bf16 %v266
    %v276 = vunpack.c.h.bf16 %v266
    %v277 = vstv %s260
    %v278 = vmul.f32 %v277, %v267
    %v279 = vmul.f32 %v277, %v268
    %v280 = vmul.f32 %v277, %v269
    %v281 = vmul.f32 %v277, %v270
    %v282 = vmul.f32 %v277, %v271
    %v283 = vmul.f32 %v277, %v272
    %v284 = vmul.f32 %v277, %v273
    %v285 = vmul.f32 %v277, %v274
    %v286 = vmul.f32 %v277, %v275
    %v287 = vmul.f32 %v277, %v276
    %v288 = vadd.f32 %v250, %v278
    %v289 = vadd.f32 %v251, %v279
    %v290 = vadd.f32 %v252, %v280
    %v291 = vadd.f32 %v253, %v281
    %v292 = vadd.f32 %v254, %v282
    %v293 = vadd.f32 %v255, %v283
    %v294 = vadd.f32 %v256, %v284
    %v295 = vadd.f32 %v257, %v285
    %v296 = vadd.f32 %v258, %v286
    %v297 = vadd.f32 %v259, %v287
    %s298 = sld [smem:[#allocation2 + $0x7]]
    %s299 = scalar_lea.vmem %s1, 280
    %v300 = vld [vmem:[%s299] sm:$0xff]
    %v301 = vld [vmem:[%s299 + $0x8] sm:$0xff]
    %v302 = vld [vmem:[%s299 + $0x10] sm:$0xff]
    %v303 = vld [vmem:[%s299 + $0x18] sm:$0xff]
    %v304 = vld [vmem:[%s299 + $0x20] sm:$0xff]
    %v305 = vunpack.c.l.bf16 %v300
    %v306 = vunpack.c.h.bf16 %v300
    %v307 = vunpack.c.l.bf16 %v301
    %v308 = vunpack.c.h.bf16 %v301
    %v309 = vunpack.c.l.bf16 %v302
    %v310 = vunpack.c.h.bf16 %v302
    %v311 = vunpack.c.l.bf16 %v303
    %v312 = vunpack.c.h.bf16 %v303
    %v313 = vunpack.c.l.bf16 %v304
    %v314 = vunpack.c.h.bf16 %v304
    %v315 = vstv %s298
    %v316 = vmul.f32 %v315, %v305
    %v317 = vmul.f32 %v315, %v306
    %v318 = vmul.f32 %v315, %v307
    %v319 = vmul.f32 %v315, %v308
    %v320 = vmul.f32 %v315, %v309
    %v321 = vmul.f32 %v315, %v310
    %v322 = vmul.f32 %v315, %v311
    %v323 = vmul.f32 %v315, %v312
    %v324 = vmul.f32 %v315, %v313
    %v325 = vmul.f32 %v315, %v314
    %v326 = vadd.f32 %v288, %v316
    %v327 = vadd.f32 %v289, %v317
    %v328 = vadd.f32 %v290, %v318
    %v329 = vadd.f32 %v291, %v319
    %v330 = vadd.f32 %v292, %v320
    %v331 = vadd.f32 %v293, %v321
    %v332 = vadd.f32 %v294, %v322
    %v333 = vadd.f32 %v295, %v323
    %v334 = vadd.f32 %v296, %v324
    %v335 = vadd.f32 %v297, %v325
    %s336 = sld [smem:[#allocation2 + $0x8]]
    %s337 = scalar_lea.vmem %s1, 320
    %v338 = vld [vmem:[%s337] sm:$0xff]
    %v339 = vld [vmem:[%s337 + $0x8] sm:$0xff]
    %v340 = vld [vmem:[%s337 + $0x10] sm:$0xff]
    %v341 = vld [vmem:[%s337 + $0x18] sm:$0xff]
    %v342 = vld [vmem:[%s337 + $0x20] sm:$0xff]
    %v343 = vunpack.c.l.bf16 %v338
    %v344 = vunpack.c.h.bf16 %v338
    %v345 = vunpack.c.l.bf16 %v339
    %v346 = vunpack.c.h.bf16 %v339
    %v347 = vunpack.c.l.bf16 %v340
    %v348 = vunpack.c.h.bf16 %v340
    %v349 = vunpack.c.l.bf16 %v341
    %v350 = vunpack.c.h.bf16 %v341
    %v351 = vunpack.c.l.bf16 %v342
    %v352 = vunpack.c.h.bf16 %v342
    %v353 = vstv %s336
    %v354 = vmul.f32 %v353, %v343
    %v355 = vmul.f32 %v353, %v344
    %v356 = vmul.f32 %v353, %v345
    %v357 = vmul.f32 %v353, %v346
    %v358 = vmul.f32 %v353, %v347
    %v359 = vmul.f32 %v353, %v348
    %v360 = vmul.f32 %v353, %v349
    %v361 = vmul.f32 %v353, %v350
    %v362 = vmul.f32 %v353, %v351
    %v363 = vmul.f32 %v353, %v352
    %v364 = vadd.f32 %v326, %v354
    %v365 = vadd.f32 %v327, %v355
    %v366 = vadd.f32 %v328, %v356
    %v367 = vadd.f32 %v329, %v357
    %v368 = vadd.f32 %v330, %v358
    %v369 = vadd.f32 %v331, %v359
    %v370 = vadd.f32 %v332, %v360
    %v371 = vadd.f32 %v333, %v361
    %v372 = vadd.f32 %v334, %v362
    %v373 = vadd.f32 %v335, %v363
    %s374 = sld [smem:[#allocation2 + $0x9]]
    %s375 = scalar_lea.vmem %s1, 360
    %v376 = vld [vmem:[%s375] sm:$0xff]
    %v377 = vld [vmem:[%s375 + $0x8] sm:$0xff]
    %v378 = vld [vmem:[%s375 + $0x10] sm:$0xff]
    %v379 = vld [vmem:[%s375 + $0x18] sm:$0xff]
    %v380 = vld [vmem:[%s375 + $0x20] sm:$0xff]
    %v381 = vunpack.c.l.bf16 %v376
    %v382 = vunpack.c.h.bf16 %v376
    %v383 = vunpack.c.l.bf16 %v377
    %v384 = vunpack.c.h.bf16 %v377
    %v385 = vunpack.c.l.bf16 %v378
    %v386 = vunpack.c.h.bf16 %v378
    %v387 = vunpack.c.l.bf16 %v379
    %v388 = vunpack.c.h.bf16 %v379
    %v389 = vunpack.c.l.bf16 %v380
    %v390 = vunpack.c.h.bf16 %v380
    %v391 = vstv %s374
    %v392 = vmul.f32 %v391, %v381
    %v393 = vmul.f32 %v391, %v382
    %v394 = vmul.f32 %v391, %v383
    %v395 = vmul.f32 %v391, %v384
    %v396 = vmul.f32 %v391, %v385
    %v397 = vmul.f32 %v391, %v386
    %v398 = vmul.f32 %v391, %v387
    %v399 = vmul.f32 %v391, %v388
    %v400 = vmul.f32 %v391, %v389
    %v401 = vmul.f32 %v391, %v390
    %v402 = vadd.f32 %v364, %v392
    %v403 = vadd.f32 %v365, %v393
    %v404 = vadd.f32 %v366, %v394
    %v405 = vadd.f32 %v367, %v395
    %v406 = vadd.f32 %v368, %v396
    %v407 = vadd.f32 %v369, %v397
    %v408 = vadd.f32 %v370, %v398
    %v409 = vadd.f32 %v371, %v399
    %v410 = vadd.f32 %v372, %v400
    %v411 = vadd.f32 %v373, %v401
    %s412 = sld [smem:[#allocation2 + $0xa]]
    %s413 = scalar_lea.vmem %s1, 400
    %v414 = vld [vmem:[%s413] sm:$0xff]
    %v415 = vld [vmem:[%s413 + $0x8] sm:$0xff]
    %v416 = vld [vmem:[%s413 + $0x10] sm:$0xff]
    %v417 = vld [vmem:[%s413 + $0x18] sm:$0xff]
    %v418 = vld [vmem:[%s413 + $0x20] sm:$0xff]
    %v419 = vunpack.c.l.bf16 %v414
    %v420 = vunpack.c.h.bf16 %v414
    %v421 = vunpack.c.l.bf16 %v415
    %v422 = vunpack.c.h.bf16 %v415
    %v423 = vunpack.c.l.bf16 %v416
    %v424 = vunpack.c.h.bf16 %v416
    %v425 = vunpack.c.l.bf16 %v417
    %v426 = vunpack.c.h.bf16 %v417
    %v427 = vunpack.c.l.bf16 %v418
    %v428 = vunpack.c.h.bf16 %v418
    %v429 = vstv %s412
    %v430 = vmul.f32 %v429, %v419
    %v431 = vmul.f32 %v429, %v420
    %v432 = vmul.f32 %v429, %v421
    %v433 = vmul.f32 %v429, %v422
    %v434 = vmul.f32 %v429, %v423
    %v435 = vmul.f32 %v429, %v424
    %v436 = vmul.f32 %v429, %v425
    %v437 = vmul.f32 %v429, %v426
    %v438 = vmul.f32 %v429, %v427
    %v439 = vmul.f32 %v429, %v428
    %v440 = vadd.f32 %v402, %v430
    %v441 = vadd.f32 %v403, %v431
    %v442 = vadd.f32 %v404, %v432
    %v443 = vadd.f32 %v405, %v433
    %v444 = vadd.f32 %v406, %v434
    %v445 = vadd.f32 %v407, %v435
    %v446 = vadd.f32 %v408, %v436
    %v447 = vadd.f32 %v409, %v437
    %v448 = vadd.f32 %v410, %v438
    %v449 = vadd.f32 %v411, %v439
    %s450 = sld [smem:[#allocation2 + $0xb]]
    %s451 = scalar_lea.vmem %s1, 440
    %v452 = vld [vmem:[%s451] sm:$0xff]
    %v453 = vld [vmem:[%s451 + $0x8] sm:$0xff]
    %v454 = vld [vmem:[%s451 + $0x10] sm:$0xff]
    %v455 = vld [vmem:[%s451 + $0x18] sm:$0xff]
    %v456 = vld [vmem:[%s451 + $0x20] sm:$0xff]
    %v457 = vunpack.c.l.bf16 %v452
    %v458 = vunpack.c.h.bf16 %v452
    %v459 = vunpack.c.l.bf16 %v453
    %v460 = vunpack.c.h.bf16 %v453
    %v461 = vunpack.c.l.bf16 %v454
    %v462 = vunpack.c.h.bf16 %v454
    %v463 = vunpack.c.l.bf16 %v455
    %v464 = vunpack.c.h.bf16 %v455
    %v465 = vunpack.c.l.bf16 %v456
    %v466 = vunpack.c.h.bf16 %v456
    %v467 = vstv %s450
    %v468 = vmul.f32 %v467, %v457
    %v469 = vmul.f32 %v467, %v458
    %v470 = vmul.f32 %v467, %v459
    %v471 = vmul.f32 %v467, %v460
    %v472 = vmul.f32 %v467, %v461
    %v473 = vmul.f32 %v467, %v462
    %v474 = vmul.f32 %v467, %v463
    %v475 = vmul.f32 %v467, %v464
    %v476 = vmul.f32 %v467, %v465
    %v477 = vmul.f32 %v467, %v466
    %v478 = vadd.f32 %v440, %v468
    %v479 = vadd.f32 %v441, %v469
    %v480 = vadd.f32 %v442, %v470
    %v481 = vadd.f32 %v443, %v471
    %v482 = vadd.f32 %v444, %v472
    %v483 = vadd.f32 %v445, %v473
    %v484 = vadd.f32 %v446, %v474
    %v485 = vadd.f32 %v447, %v475
    %v486 = vadd.f32 %v448, %v476
    %v487 = vadd.f32 %v449, %v477
    %s488 = sld [smem:[#allocation2 + $0xc]]
    %s489 = scalar_lea.vmem %s1, 480
    %v490 = vld [vmem:[%s489] sm:$0xff]
    %v491 = vld [vmem:[%s489 + $0x8] sm:$0xff]
    %v492 = vld [vmem:[%s489 + $0x10] sm:$0xff]
    %v493 = vld [vmem:[%s489 + $0x18] sm:$0xff]
    %v494 = vld [vmem:[%s489 + $0x20] sm:$0xff]
    %v495 = vunpack.c.l.bf16 %v490
    %v496 = vunpack.c.h.bf16 %v490
    %v497 = vunpack.c.l.bf16 %v491
    %v498 = vunpack.c.h.bf16 %v491
    %v499 = vunpack.c.l.bf16 %v492
    %v500 = vunpack.c.h.bf16 %v492
    %v501 = vunpack.c.l.bf16 %v493
    %v502 = vunpack.c.h.bf16 %v493
    %v503 = vunpack.c.l.bf16 %v494
    %v504 = vunpack.c.h.bf16 %v494
    %v505 = vstv %s488
    %v506 = vmul.f32 %v505, %v495
    %v507 = vmul.f32 %v505, %v496
    %v508 = vmul.f32 %v505, %v497
    %v509 = vmul.f32 %v505, %v498
    %v510 = vmul.f32 %v505, %v499
    %v511 = vmul.f32 %v505, %v500
    %v512 = vmul.f32 %v505, %v501
    %v513 = vmul.f32 %v505, %v502
    %v514 = vmul.f32 %v505, %v503
    %v515 = vmul.f32 %v505, %v504
    %v516 = vadd.f32 %v478, %v506
    %v517 = vadd.f32 %v479, %v507
    %v518 = vadd.f32 %v480, %v508
    %v519 = vadd.f32 %v481, %v509
    %v520 = vadd.f32 %v482, %v510
    %v521 = vadd.f32 %v483, %v511
    %v522 = vadd.f32 %v484, %v512
    %v523 = vadd.f32 %v485, %v513
    %v524 = vadd.f32 %v486, %v514
    %v525 = vadd.f32 %v487, %v515
    %s526 = sld [smem:[#allocation2 + $0xd]]
    %s527 = scalar_lea.vmem %s1, 520
    %v528 = vld [vmem:[%s527] sm:$0xff]
    %v529 = vld [vmem:[%s527 + $0x8] sm:$0xff]
    %v530 = vld [vmem:[%s527 + $0x10] sm:$0xff]
    %v531 = vld [vmem:[%s527 + $0x18] sm:$0xff]
    %v532 = vld [vmem:[%s527 + $0x20] sm:$0xff]
    %v533 = vunpack.c.l.bf16 %v528
    %v534 = vunpack.c.h.bf16 %v528
    %v535 = vunpack.c.l.bf16 %v529
    %v536 = vunpack.c.h.bf16 %v529
    %v537 = vunpack.c.l.bf16 %v530
    %v538 = vunpack.c.h.bf16 %v530
    %v539 = vunpack.c.l.bf16 %v531
    %v540 = vunpack.c.h.bf16 %v531
    %v541 = vunpack.c.l.bf16 %v532
    %v542 = vunpack.c.h.bf16 %v532
    %v543 = vstv %s526
    %v544 = vmul.f32 %v543, %v533
    %v545 = vmul.f32 %v543, %v534
    %v546 = vmul.f32 %v543, %v535
    %v547 = vmul.f32 %v543, %v536
    %v548 = vmul.f32 %v543, %v537
    %v549 = vmul.f32 %v543, %v538
    %v550 = vmul.f32 %v543, %v539
    %v551 = vmul.f32 %v543, %v540
    %v552 = vmul.f32 %v543, %v541
    %v553 = vmul.f32 %v543, %v542
    %v554 = vadd.f32 %v516, %v544
    %v555 = vadd.f32 %v517, %v545
    %v556 = vadd.f32 %v518, %v546
    %v557 = vadd.f32 %v519, %v547
    %v558 = vadd.f32 %v520, %v548
    %v559 = vadd.f32 %v521, %v549
    %v560 = vadd.f32 %v522, %v550
    %v561 = vadd.f32 %v523, %v551
    %v562 = vadd.f32 %v524, %v552
    %v563 = vadd.f32 %v525, %v553
    %s564 = sld [smem:[#allocation2 + $0x17]]
    %v565 = vstv %s564
    %v566 = vadd.f32 %v554, %v565
    %v567 = vadd.f32 %v555, %v565
    %v568 = vadd.f32 %v556, %v565
    %v569 = vadd.f32 %v557, %v565
    %v570 = vadd.f32 %v558, %v565
    %v571 = vadd.f32 %v559, %v565
    %v572 = vadd.f32 %v560, %v565
    %v573 = vadd.f32 %v561, %v565
    %v574 = vadd.f32 %v562, %v565
    %v575 = vadd.f32 %v563, %v565
    %v576 = vmax.f32 %v566, 0.0
    %v577 = vmax.f32 %v567, 0.0
    %v578 = vmax.f32 %v568, 0.0
    %v579 = vmax.f32 %v569, 0.0
    %v580 = vmax.f32 %v570, 0.0
    %v581 = vmax.f32 %v571, 0.0
    %v582 = vmax.f32 %v572, 0.0
    %v583 = vmax.f32 %v573, 0.0
    %v584 = vmax.f32 %v574, 0.0
    %v585 = vmax.f32 %v575, 0.0
    %586 = vrot.lane.b32.xlu0 %v576, 127
    %v587 = vpop.permute.xlu0 %586
    %588 = vrot.lane.b32.xlu0 %v577, 127
    %v589 = vpop.permute.xlu0 %588
    %590 = vrot.lane.b32.xlu0 %v578, 127
    %v591 = vpop.permute.xlu0 %590
    %592 = vrot.lane.b32.xlu0 %v579, 127
    %v593 = vpop.permute.xlu0 %592
    %594 = vrot.lane.b32.xlu0 %v580, 127
    %v595 = vpop.permute.xlu0 %594
    %596 = vrot.lane.b32.xlu0 %v581, 127
    %v597 = vpop.permute.xlu0 %596
    %598 = vrot.lane.b32.xlu0 %v582, 127
    %v599 = vpop.permute.xlu0 %598
    %600 = vrot.lane.b32.xlu0 %v583, 127
    %v601 = vpop.permute.xlu0 %600
    %602 = vrot.lane.b32.xlu0 %v584, 127
    %v603 = vpop.permute.xlu0 %602
    %604 = vrot.lane.b32.xlu0 %v585, 127
    %v605 = vpop.permute.xlu0 %604
    %v606 = vlaneseq
    %v607 = vand.u32 %v606, 127
    %vm608 = vcmp.lt.s32.totalorder %v607, 127
    %v609 = vsel %vm608, %v603, %v605
    %v610 = vsel %vm608, %v601, %v603
    %v611 = vsel %vm608, %v599, %v601
    %v612 = vsel %vm608, %v597, %v599
    %v613 = vsel %vm608, %v595, %v597
    %v614 = vsel %vm608, %v593, %v595
    %v615 = vsel %vm608, %v591, %v593
    %v616 = vsel %vm608, %v589, %v591
    %v617 = vsel %vm608, %v587, %v589
    %v618 = vsel %vm608, %v605, %v587
    %619 = vrot.lane.b32.xlu0 %v576, 126
    %v620 = vpop.permute.xlu0 %619
    %621 = vrot.lane.b32.xlu0 %v577, 126
    %v622 = vpop.permute.xlu0 %621
    %623 = vrot.lane.b32.xlu0 %v578, 126
    %v624 = vpop.permute.xlu0 %623
    %625 = vrot.lane.b32.xlu0 %v579, 126
    %v626 = vpop.permute.xlu0 %625
    %627 = vrot.lane.b32.xlu0 %v580, 126
    %v628 = vpop.permute.xlu0 %627
    %629 = vrot.lane.b32.xlu0 %v581, 126
    %v630 = vpop.permute.xlu0 %629
    %631 = vrot.lane.b32.xlu0 %v582, 126
    %v632 = vpop.permute.xlu0 %631
    %633 = vrot.lane.b32.xlu0 %v583, 126
    %v634 = vpop.permute.xlu0 %633
    %635 = vrot.lane.b32.xlu0 %v584, 126
    %v636 = vpop.permute.xlu0 %635
    %637 = vrot.lane.b32.xlu0 %v585, 126
    %v638 = vpop.permute.xlu0 %637
    %vm639 = vcmp.lt.s32.totalorder %v607, 126
    %v640 = vsel %vm639, %v636, %v638
    %v641 = vsel %vm639, %v634, %v636
    %v642 = vsel %vm639, %v632, %v634
    %v643 = vsel %vm639, %v630, %v632
    %v644 = vsel %vm639, %v628, %v630
    %v645 = vsel %vm639, %v626, %v628
    %v646 = vsel %vm639, %v624, %v626
    %v647 = vsel %vm639, %v622, %v624
    %v648 = vsel %vm639, %v620, %v622
    %v649 = vsel %vm639, %v638, %v620
    %s650 = sld [smem:[#allocation2 + $0xe]]
    %v651 = vstv %s650
    %v652 = vmul.f32 %v651, %v576
    %v653 = vmul.f32 %v651, %v577
    %v654 = vmul.f32 %v651, %v578
    %v655 = vmul.f32 %v651, %v579
    %v656 = vmul.f32 %v651, %v580
    %v657 = vmul.f32 %v651, %v581
    %v658 = vmul.f32 %v651, %v582
    %v659 = vmul.f32 %v651, %v583
    %v660 = vmul.f32 %v651, %v584
    %v661 = vmul.f32 %v651, %v585
    %s662 = sld [smem:[#allocation2 + $0xf]]
    %v663 = vstv %s662
    %v664 = vmul.f32 %v663, %v617
    %v665 = vmul.f32 %v663, %v616
    %v666 = vmul.f32 %v663, %v615
    %v667 = vmul.f32 %v663, %v614
    %v668 = vmul.f32 %v663, %v613
    %v669 = vmul.f32 %v663, %v612
    %v670 = vmul.f32 %v663, %v611
    %v671 = vmul.f32 %v663, %v610
    %v672 = vmul.f32 %v663, %v609
    %v673 = vmul.f32 %v663, %v618
    %v674 = vadd.f32 %v652, %v664
    %v675 = vadd.f32 %v653, %v665
    %v676 = vadd.f32 %v654, %v666
    %v677 = vadd.f32 %v655, %v667
    %v678 = vadd.f32 %v656, %v668
    %v679 = vadd.f32 %v657, %v669
    %v680 = vadd.f32 %v658, %v670
    %v681 = vadd.f32 %v659, %v671
    %v682 = vadd.f32 %v660, %v672
    %v683 = vadd.f32 %v661, %v673
    %s684 = sld [smem:[#allocation2 + $0x10]]
    %v685 = vstv %s684
    %v686 = vmul.f32 %v685, %v648
    %v687 = vmul.f32 %v685, %v647
    %v688 = vmul.f32 %v685, %v646
    %v689 = vmul.f32 %v685, %v645
    %v690 = vmul.f32 %v685, %v644
    %v691 = vmul.f32 %v685, %v643
    %v692 = vmul.f32 %v685, %v642
    %v693 = vmul.f32 %v685, %v641
    %v694 = vmul.f32 %v685, %v640
    %v695 = vmul.f32 %v685, %v649
    %v696 = vadd.f32 %v674, %v686
    %v697 = vadd.f32 %v675, %v687
    %v698 = vadd.f32 %v676, %v688
    %v699 = vadd.f32 %v677, %v689
    %v700 = vadd.f32 %v678, %v690
    %v701 = vadd.f32 %v679, %v691
    %v702 = vadd.f32 %v680, %v692
    %v703 = vadd.f32 %v681, %v693
    %v704 = vadd.f32 %v682, %v694
    %v705 = vadd.f32 %v683, %v695
    %s706 = sld [smem:[#allocation2 + $0x18]]
    %v707 = vstv %s706
    %v708 = vadd.f32 %v696, %v707
    %v709 = vadd.f32 %v697, %v707
    %v710 = vadd.f32 %v698, %v707
    %v711 = vadd.f32 %v699, %v707
    %v712 = vadd.f32 %v700, %v707
    %v713 = vadd.f32 %v701, %v707
    %v714 = vadd.f32 %v702, %v707
    %v715 = vadd.f32 %v703, %v707
    %v716 = vadd.f32 %v704, %v707
    %v717 = vadd.f32 %v705, %v707
    %v718 = vmax.f32 %v708, 0.0
    %v719 = vmax.f32 %v709, 0.0
    %v720 = vmax.f32 %v710, 0.0
    %v721 = vmax.f32 %v711, 0.0
    %v722 = vmax.f32 %v712, 0.0
    %v723 = vmax.f32 %v713, 0.0
    %v724 = vmax.f32 %v714, 0.0
    %v725 = vmax.f32 %v715, 0.0
    %v726 = vmax.f32 %v716, 0.0
    %v727 = vmax.f32 %v717, 0.0
    %728 = vrot.lane.b32.xlu0 %v718, 127
    %v729 = vpop.permute.xlu0 %728
    %730 = vrot.lane.b32.xlu0 %v719, 127
    %v731 = vpop.permute.xlu0 %730
    %732 = vrot.lane.b32.xlu0 %v720, 127
    %v733 = vpop.permute.xlu0 %732
    %734 = vrot.lane.b32.xlu0 %v721, 127
    %v735 = vpop.permute.xlu0 %734
    %736 = vrot.lane.b32.xlu0 %v722, 127
    %v737 = vpop.permute.xlu0 %736
    %738 = vrot.lane.b32.xlu0 %v723, 127
    %v739 = vpop.permute.xlu0 %738
    %740 = vrot.lane.b32.xlu0 %v724, 127
    %v741 = vpop.permute.xlu0 %740
    %742 = vrot.lane.b32.xlu0 %v725, 127
    %v743 = vpop.permute.xlu0 %742
    %744 = vrot.lane.b32.xlu0 %v726, 127
    %v745 = vpop.permute.xlu0 %744
    %746 = vrot.lane.b32.xlu0 %v727, 127
    %v747 = vpop.permute.xlu0 %746
    %v748 = vsel %vm608, %v745, %v747
    %v749 = vsel %vm608, %v743, %v745
    %v750 = vsel %vm608, %v741, %v743
    %v751 = vsel %vm608, %v739, %v741
    %v752 = vsel %vm608, %v737, %v739
    %v753 = vsel %vm608, %v735, %v737
    %v754 = vsel %vm608, %v733, %v735
    %v755 = vsel %vm608, %v731, %v733
    %v756 = vsel %vm608, %v729, %v731
    %v757 = vsel %vm608, %v747, %v729
    %758 = vrot.lane.b32.xlu0 %v718, 126
    %v759 = vpop.permute.xlu0 %758
    %760 = vrot.lane.b32.xlu0 %v719, 126
    %v761 = vpop.permute.xlu0 %760
    %762 = vrot.lane.b32.xlu0 %v720, 126
    %v763 = vpop.permute.xlu0 %762
    %764 = vrot.lane.b32.xlu0 %v721, 126
    %v765 = vpop.permute.xlu0 %764
    %766 = vrot.lane.b32.xlu0 %v722, 126
    %v767 = vpop.permute.xlu0 %766
    %768 = vrot.lane.b32.xlu0 %v723, 126
    %v769 = vpop.permute.xlu0 %768
    %770 = vrot.lane.b32.xlu0 %v724, 126
    %v771 = vpop.permute.xlu0 %770
    %772 = vrot.lane.b32.xlu0 %v725, 126
    %v773 = vpop.permute.xlu0 %772
    %774 = vrot.lane.b32.xlu0 %v726, 126
    %v775 = vpop.permute.xlu0 %774
    %776 = vrot.lane.b32.xlu0 %v727, 126
    %v777 = vpop.permute.xlu0 %776
    %v778 = vsel %vm639, %v775, %v777
    %v779 = vsel %vm639, %v773, %v775
    %v780 = vsel %vm639, %v771, %v773
    %v781 = vsel %vm639, %v769, %v771
    %v782 = vsel %vm639, %v767, %v769
    %v783 = vsel %vm639, %v765, %v767
    %v784 = vsel %vm639, %v763, %v765
    %v785 = vsel %vm639, %v761, %v763
    %v786 = vsel %vm639, %v759, %v761
    %v787 = vsel %vm639, %v777, %v759
    %s788 = sld [smem:[#allocation2 + $0x11]]
    %v789 = vstv %s788
    %v790 = vmul.f32 %v789, %v718
    %v791 = vmul.f32 %v789, %v719
    %v792 = vmul.f32 %v789, %v720
    %v793 = vmul.f32 %v789, %v721
    %v794 = vmul.f32 %v789, %v722
    %v795 = vmul.f32 %v789, %v723
    %v796 = vmul.f32 %v789, %v724
    %v797 = vmul.f32 %v789, %v725
    %v798 = vmul.f32 %v789, %v726
    %v799 = vmul.f32 %v789, %v727
    %s800 = sld [smem:[#allocation2 + $0x12]]
    %v801 = vstv %s800
    %v802 = vmul.f32 %v801, %v756
    %v803 = vmul.f32 %v801, %v755
    %v804 = vmul.f32 %v801, %v754
    %v805 = vmul.f32 %v801, %v753
    %v806 = vmul.f32 %v801, %v752
    %v807 = vmul.f32 %v801, %v751
    %v808 = vmul.f32 %v801, %v750
    %v809 = vmul.f32 %v801, %v749
    %v810 = vmul.f32 %v801, %v748
    %v811 = vmul.f32 %v801, %v757
    %v812 = vadd.f32 %v790, %v802
    %v813 = vadd.f32 %v791, %v803
    %v814 = vadd.f32 %v792, %v804
    %v815 = vadd.f32 %v793, %v805
    %v816 = vadd.f32 %v794, %v806
    %v817 = vadd.f32 %v795, %v807
    %v818 = vadd.f32 %v796, %v808
    %v819 = vadd.f32 %v797, %v809
    %v820 = vadd.f32 %v798, %v810
    %v821 = vadd.f32 %v799, %v811
    %s822 = sld [smem:[#allocation2 + $0x13]]
    %v823 = vstv %s822
    %v824 = vmul.f32 %v823, %v786
    %v825 = vmul.f32 %v823, %v785
    %v826 = vmul.f32 %v823, %v784
    %v827 = vmul.f32 %v823, %v783
    %v828 = vmul.f32 %v823, %v782
    %v829 = vmul.f32 %v823, %v781
    %v830 = vmul.f32 %v823, %v780
    %v831 = vmul.f32 %v823, %v779
    %v832 = vmul.f32 %v823, %v778
    %v833 = vmul.f32 %v823, %v787
    %v834 = vadd.f32 %v812, %v824
    %v835 = vadd.f32 %v813, %v825
    %v836 = vadd.f32 %v814, %v826
    %v837 = vadd.f32 %v815, %v827
    %v838 = vadd.f32 %v816, %v828
    %v839 = vadd.f32 %v817, %v829
    %v840 = vadd.f32 %v818, %v830
    %v841 = vadd.f32 %v819, %v831
    %v842 = vadd.f32 %v820, %v832
    %v843 = vadd.f32 %v821, %v833
    %s844 = sld [smem:[#allocation2 + $0x19]]
    %v845 = vstv %s844
    %v846 = vadd.f32 %v834, %v845
    %v847 = vadd.f32 %v835, %v845
    %v848 = vadd.f32 %v836, %v845
    %v849 = vadd.f32 %v837, %v845
    %v850 = vadd.f32 %v838, %v845
    %v851 = vadd.f32 %v839, %v845
    %v852 = vadd.f32 %v840, %v845
    %v853 = vadd.f32 %v841, %v845
    %v854 = vadd.f32 %v842, %v845
    %v855 = vadd.f32 %v843, %v845
    %v856 = vmax.f32 %v846, 0.0
    %v857 = vmax.f32 %v847, 0.0
    %v858 = vmax.f32 %v848, 0.0
    %v859 = vmax.f32 %v849, 0.0
    %v860 = vmax.f32 %v850, 0.0
    %v861 = vmax.f32 %v851, 0.0
    %v862 = vmax.f32 %v852, 0.0
    %v863 = vmax.f32 %v853, 0.0
    %v864 = vmax.f32 %v854, 0.0
    %v865 = vmax.f32 %v855, 0.0
    %866 = vrot.lane.b32.xlu0 %v856, 127
    %v867 = vpop.permute.xlu0 %866
    %868 = vrot.lane.b32.xlu0 %v857, 127
    %v869 = vpop.permute.xlu0 %868
    %870 = vrot.lane.b32.xlu0 %v858, 127
    %v871 = vpop.permute.xlu0 %870
    %872 = vrot.lane.b32.xlu0 %v859, 127
    %v873 = vpop.permute.xlu0 %872
    %874 = vrot.lane.b32.xlu0 %v860, 127
    %v875 = vpop.permute.xlu0 %874
    %876 = vrot.lane.b32.xlu0 %v861, 127
    %v877 = vpop.permute.xlu0 %876
    %878 = vrot.lane.b32.xlu0 %v862, 127
    %v879 = vpop.permute.xlu0 %878
    %880 = vrot.lane.b32.xlu0 %v863, 127
    %v881 = vpop.permute.xlu0 %880
    %882 = vrot.lane.b32.xlu0 %v864, 127
    %v883 = vpop.permute.xlu0 %882
    %884 = vrot.lane.b32.xlu0 %v865, 127
    %v885 = vpop.permute.xlu0 %884
    %v886 = vsel %vm608, %v883, %v885
    %v887 = vsel %vm608, %v881, %v883
    %v888 = vsel %vm608, %v879, %v881
    %v889 = vsel %vm608, %v877, %v879
    %v890 = vsel %vm608, %v875, %v877
    %v891 = vsel %vm608, %v873, %v875
    %v892 = vsel %vm608, %v871, %v873
    %v893 = vsel %vm608, %v869, %v871
    %v894 = vsel %vm608, %v867, %v869
    %v895 = vsel %vm608, %v885, %v867
    %896 = vrot.lane.b32.xlu0 %v856, 126
    %v897 = vpop.permute.xlu0 %896
    %898 = vrot.lane.b32.xlu0 %v857, 126
    %v899 = vpop.permute.xlu0 %898
    %900 = vrot.lane.b32.xlu0 %v858, 126
    %v901 = vpop.permute.xlu0 %900
    %902 = vrot.lane.b32.xlu0 %v859, 126
    %v903 = vpop.permute.xlu0 %902
    %904 = vrot.lane.b32.xlu0 %v860, 126
    %v905 = vpop.permute.xlu0 %904
    %906 = vrot.lane.b32.xlu0 %v861, 126
    %v907 = vpop.permute.xlu0 %906
    %908 = vrot.lane.b32.xlu0 %v862, 126
    %v909 = vpop.permute.xlu0 %908
    %910 = vrot.lane.b32.xlu0 %v863, 126
    %v911 = vpop.permute.xlu0 %910
    %912 = vrot.lane.b32.xlu0 %v864, 126
    %v913 = vpop.permute.xlu0 %912
    %914 = vrot.lane.b32.xlu0 %v865, 126
    %v915 = vpop.permute.xlu0 %914
    %v916 = vsel %vm639, %v913, %v915
    %v917 = vsel %vm639, %v911, %v913
    %v918 = vsel %vm639, %v909, %v911
    %v919 = vsel %vm639, %v907, %v909
    %v920 = vsel %vm639, %v905, %v907
    %v921 = vsel %vm639, %v903, %v905
    %v922 = vsel %vm639, %v901, %v903
    %v923 = vsel %vm639, %v899, %v901
    %v924 = vsel %vm639, %v897, %v899
    %v925 = vsel %vm639, %v915, %v897
    %s926 = sld [smem:[#allocation2 + $0x14]]
    %v927 = vstv %s926
    %v928 = vmul.f32 %v927, %v856
    %v929 = vmul.f32 %v927, %v857
    %v930 = vmul.f32 %v927, %v858
    %v931 = vmul.f32 %v927, %v859
    %v932 = vmul.f32 %v927, %v860
    %v933 = vmul.f32 %v927, %v861
    %v934 = vmul.f32 %v927, %v862
    %v935 = vmul.f32 %v927, %v863
    %v936 = vmul.f32 %v927, %v864
    %v937 = vmul.f32 %v927, %v865
    %s938 = sld [smem:[#allocation2 + $0x15]]
    %v939 = vstv %s938
    %v940 = vmul.f32 %v939, %v894
    %v941 = vmul.f32 %v939, %v893
    %v942 = vmul.f32 %v939, %v892
    %v943 = vmul.f32 %v939, %v891
    %v944 = vmul.f32 %v939, %v890
    %v945 = vmul.f32 %v939, %v889
    %v946 = vmul.f32 %v939, %v888
    %v947 = vmul.f32 %v939, %v887
    %v948 = vmul.f32 %v939, %v886
    %v949 = vmul.f32 %v939, %v895
    %v950 = vadd.f32 %v928, %v940
    %v951 = vadd.f32 %v929, %v941
    %v952 = vadd.f32 %v930, %v942
    %v953 = vadd.f32 %v931, %v943
    %v954 = vadd.f32 %v932, %v944
    %v955 = vadd.f32 %v933, %v945
    %v956 = vadd.f32 %v934, %v946
    %v957 = vadd.f32 %v935, %v947
    %v958 = vadd.f32 %v936, %v948
    %v959 = vadd.f32 %v937, %v949
    %s960 = sld [smem:[#allocation2 + $0x16]]
    %v961 = vstv %s960
    %v962 = vmul.f32 %v961, %v924
    %v963 = vmul.f32 %v961, %v923
    %v964 = vmul.f32 %v961, %v922
    %v965 = vmul.f32 %v961, %v921
    %v966 = vmul.f32 %v961, %v920
    %v967 = vmul.f32 %v961, %v919
    %v968 = vmul.f32 %v961, %v918
    %v969 = vmul.f32 %v961, %v917
    %v970 = vmul.f32 %v961, %v916
    %v971 = vmul.f32 %v961, %v925
    %v972 = vadd.f32 %v950, %v962
    %v973 = vadd.f32 %v951, %v963
    %v974 = vadd.f32 %v952, %v964
    %v975 = vadd.f32 %v953, %v965
    %v976 = vadd.f32 %v954, %v966
    %v977 = vadd.f32 %v955, %v967
    %v978 = vadd.f32 %v956, %v968
    %v979 = vadd.f32 %v957, %v969
    %v980 = vadd.f32 %v958, %v970
    %v981 = vadd.f32 %v959, %v971
    %s982 = sld [smem:[#allocation2 + $0x1a]]
    %v983 = vstv %s982
    %v984 = vadd.f32 %v972, %v983
    %v985 = vadd.f32 %v973, %v983
    %v986 = vadd.f32 %v974, %v983
    %v987 = vadd.f32 %v975, %v983
    %v988 = vadd.f32 %v976, %v983
    %v989 = vadd.f32 %v977, %v983
    %v990 = vadd.f32 %v978, %v983
    %v991 = vadd.f32 %v979, %v983
    %v992 = vadd.f32 %v980, %v983
    %v993 = vadd.f32 %v981, %v983
    %v994 = vmax.f32 %v984, 0.0
    %v995 = vmax.f32 %v985, 0.0
    %v996 = vmax.f32 %v986, 0.0
    %v997 = vmax.f32 %v987, 0.0
    %v998 = vmax.f32 %v988, 0.0
    %v999 = vmax.f32 %v989, 0.0
    %v1000 = vmax.f32 %v990, 0.0
    %v1001 = vmax.f32 %v991, 0.0
    %v1002 = vmax.f32 %v992, 0.0
    %v1003 = vmax.f32 %v993, 0.0
    %v1004 = vadd.s32 %v607, 128
    %v1005 = vadd.s32 %v607, 256
    %v1006 = vadd.s32 %v607, 384
    %v1007 = vadd.s32 %v607, 512
    %v1008 = vadd.s32 %v607, 640
    %v1009 = vadd.s32 %v607, 768
    %v1010 = vadd.s32 %v607, 896
    %v1011 = vadd.s32 %v607, 1024
    %v1012 = vadd.s32 %v607, 1152
    %vm1013 = vcmp.lt.s32.totalorder %v607, 1274
    %vm1014 = vcmp.lt.s32.totalorder %v1004, 1274
    %vm1015 = vcmp.lt.s32.totalorder %v1005, 1274
    %vm1016 = vcmp.lt.s32.totalorder %v1006, 1274
    %vm1017 = vcmp.lt.s32.totalorder %v1007, 1274
    %vm1018 = vcmp.lt.s32.totalorder %v1008, 1274
    %vm1019 = vcmp.lt.s32.totalorder %v1009, 1274
    %vm1020 = vcmp.lt.s32.totalorder %v1010, 1274
    %vm1021 = vcmp.lt.s32.totalorder %v1011, 1274
    %vm1022 = vcmp.lt.s32.totalorder %v1012, 1274
    %v1023 = vsel %vm1013, %v994, 0.0
    %v1024 = vsel %vm1014, %v995, 0.0
    %v1025 = vsel %vm1015, %v996, 0.0
    %v1026 = vsel %vm1016, %v997, 0.0
    %v1027 = vsel %vm1017, %v998, 0.0
    %v1028 = vsel %vm1018, %v999, 0.0
    %v1029 = vsel %vm1019, %v1000, 0.0
    %v1030 = vsel %vm1020, %v1001, 0.0
    %v1031 = vsel %vm1021, %v1002, 0.0
    %v1032 = vsel %vm1022, %v1003, 0.0
    %v1033 = vpack.c.bf16 %v1023, %v1023
    %v1034 = vpack.c.bf16 %v1024, %v1024
    %v1035 = vpack.c.bf16 %v1025, %v1025
    %v1036 = vpack.c.bf16 %v1026, %v1026
    %v1037 = vpack.c.bf16 %v1027, %v1027
    %v1038 = vpack.c.bf16 %v1028, %v1028
    %v1039 = vpack.c.bf16 %v1029, %v1029
    %v1040 = vpack.c.bf16 %v1030, %v1030
    %v1041 = vpack.c.bf16 %v1031, %v1031
    %v1042 = vpack.c.bf16 %v1032, %v1032
    %v1043 = vld [vmem:[%s2] sm:$0xf]
    %v1044 = vld [vmem:[%s2 + $0x4] sm:$0xf]
    %v1045 = vld [vmem:[%s2 + $0x8] sm:$0xf]
    %v1046 = vld [vmem:[%s2 + $0xc] sm:$0xf]
    %v1047 = vld [vmem:[%s2 + $0x10] sm:$0xf]
    %v1048 = vld [vmem:[%s2 + $0x14] sm:$0xf]
    %v1049 = vld [vmem:[%s2 + $0x18] sm:$0xf]
    %v1050 = vld [vmem:[%s2 + $0x1c] sm:$0xf]
    %v1051 = vld [vmem:[%s2 + $0x20] sm:$0xf]
    %v1052 = vld [vmem:[%s2 + $0x24] sm:$0xf]
    %v1053 = vld [vmem:[%s2 + $0x28] sm:$0xf]
    %v1054 = vld [vmem:[%s2 + $0x2c] sm:$0xf]
    %v1055 = vld [vmem:[%s2 + $0x30] sm:$0xf]
    %v1056 = vld [vmem:[%s2 + $0x34] sm:$0xf]
    %v1057 = vld [vmem:[%s2 + $0x38] sm:$0xf]
    %v1058 = vld [vmem:[%s2 + $0x3c] sm:$0xf]
    %v1059 = vld [vmem:[%s2 + $0x40] sm:$0xf]
    %v1060 = vld [vmem:[%s2 + $0x44] sm:$0xf]
    %v1061 = vld [vmem:[%s2 + $0x48] sm:$0xf]
    %v1062 = vld [vmem:[%s2 + $0x4c] sm:$0xf]
    %v1063 = vld [vmem:[%s2 + $0x50] sm:$0xf]
    %v1064 = vld [vmem:[%s2 + $0x54] sm:$0xf]
    %v1065 = vld [vmem:[%s2 + $0x58] sm:$0xf]
    %v1066 = vld [vmem:[%s2 + $0x5c] sm:$0xf]
    %v1067 = vld [vmem:[%s2 + $0x60] sm:$0xf]
    %v1068 = vld [vmem:[%s2 + $0x64] sm:$0xf]
    %v1069 = vld [vmem:[%s2 + $0x68] sm:$0xf]
    %v1070 = vld [vmem:[%s2 + $0x6c] sm:$0xf]
    %v1071 = vld [vmem:[%s2 + $0x70] sm:$0xf]
    %v1072 = vld [vmem:[%s2 + $0x74] sm:$0xf]
    %v1073 = vld [vmem:[%s2 + $0x78] sm:$0xf]
    %v1074 = vld [vmem:[%s2 + $0x7c] sm:$0xf]
    %v1075 = vld [vmem:[%s2 + $0x80] sm:$0xf]
    %v1076 = vld [vmem:[%s2 + $0x84] sm:$0xf]
    %v1077 = vld [vmem:[%s2 + $0x88] sm:$0xf]
    %v1078 = vld [vmem:[%s2 + $0x8c] sm:$0xf]
    %v1079 = vld [vmem:[%s2 + $0x90] sm:$0xf]
    %v1080 = vld [vmem:[%s2 + $0x94] sm:$0xf]
    %v1081 = vld [vmem:[%s2 + $0x98] sm:$0xf]
    %v1082 = vld [vmem:[%s2 + $0x9c] sm:$0xf]
    %v1083 = vld [vmem:[%s2 + $0xa0] sm:$0xf]
    %v1084 = vld [vmem:[%s2 + $0xa4] sm:$0xf]
    %v1085 = vld [vmem:[%s2 + $0xa8] sm:$0xf]
    %v1086 = vld [vmem:[%s2 + $0xac] sm:$0xf]
    %v1087 = vld [vmem:[%s2 + $0xb0] sm:$0xf]
    %v1088 = vld [vmem:[%s2 + $0xb4] sm:$0xf]
    %v1089 = vld [vmem:[%s2 + $0xb8] sm:$0xf]
    %v1090 = vld [vmem:[%s2 + $0xbc] sm:$0xf]
    %v1091 = vld [vmem:[%s2 + $0xc0] sm:$0xf]
    %v1092 = vld [vmem:[%s2 + $0xc4] sm:$0xf]
    %v1093 = vld [vmem:[%s2 + $0xc8] sm:$0xf]
    %v1094 = vld [vmem:[%s2 + $0xcc] sm:$0xf]
    %v1095 = vld [vmem:[%s2 + $0xd0] sm:$0xf]
    %v1096 = vld [vmem:[%s2 + $0xd4] sm:$0xf]
    %v1097 = vld [vmem:[%s2 + $0xd8] sm:$0xf]
    %v1098 = vld [vmem:[%s2 + $0xdc] sm:$0xf]
    %v1099 = vld [vmem:[%s2 + $0xe0] sm:$0xf]
    %v1100 = vld [vmem:[%s2 + $0xe4] sm:$0xf]
    %v1101 = vld [vmem:[%s2 + $0xe8] sm:$0xf]
    %v1102 = vld [vmem:[%s2 + $0xec] sm:$0xf]
    %v1103 = vld [vmem:[%s2 + $0xf0] sm:$0xf]
    %v1104 = vld [vmem:[%s2 + $0xf4] sm:$0xf]
    %v1105 = vld [vmem:[%s2 + $0xf8] sm:$0xf]
    %v1106 = vld [vmem:[%s2 + $0xfc] sm:$0xf]
    %v1107 = vld [vmem:[%s2 + $0x100] sm:$0xf]
    %v1108 = vld [vmem:[%s2 + $0x104] sm:$0xf]
    %v1109 = vld [vmem:[%s2 + $0x108] sm:$0xf]
    %v1110 = vld [vmem:[%s2 + $0x10c] sm:$0xf]
    %v1111 = vld [vmem:[%s2 + $0x110] sm:$0xf]
    %v1112 = vld [vmem:[%s2 + $0x114] sm:$0xf]
    %v1113 = vld [vmem:[%s2 + $0x118] sm:$0xf]
    %v1114 = vld [vmem:[%s2 + $0x11c] sm:$0xf]
    %v1115 = vld [vmem:[%s2 + $0x120] sm:$0xf]
    %v1116 = vld [vmem:[%s2 + $0x124] sm:$0xf]
    %v1117 = vld [vmem:[%s2 + $0x128] sm:$0xf]
    %v1118 = vld [vmem:[%s2 + $0x12c] sm:$0xf]
    %v1119 = vld [vmem:[%s2 + $0x130] sm:$0xf]
    %v1120 = vld [vmem:[%s2 + $0x134] sm:$0xf]
    %v1121 = vld [vmem:[%s2 + $0x138] sm:$0xf]
    %v1122 = vld [vmem:[%s2 + $0x13c] sm:$0xf]
    %v1123 = vld [vmem:[%s2 + $0x140] sm:$0xf]
    %v1124 = vld [vmem:[%s2 + $0x144] sm:$0xf]
    %v1125 = vld [vmem:[%s2 + $0x148] sm:$0xf]
    %v1126 = vld [vmem:[%s2 + $0x14c] sm:$0xf]
    %v1127 = vld [vmem:[%s2 + $0x150] sm:$0xf]
    %v1128 = vld [vmem:[%s2 + $0x154] sm:$0xf]
    %v1129 = vld [vmem:[%s2 + $0x158] sm:$0xf]
    %v1130 = vld [vmem:[%s2 + $0x15c] sm:$0xf]
    %v1131 = vld [vmem:[%s2 + $0x160] sm:$0xf]
    %v1132 = vld [vmem:[%s2 + $0x164] sm:$0xf]
    %v1133 = vld [vmem:[%s2 + $0x168] sm:$0xf]
    %v1134 = vld [vmem:[%s2 + $0x16c] sm:$0xf]
    %v1135 = vld [vmem:[%s2 + $0x170] sm:$0xf]
    %v1136 = vld [vmem:[%s2 + $0x174] sm:$0xf]
    %v1137 = vld [vmem:[%s2 + $0x178] sm:$0xf]
    %v1138 = vld [vmem:[%s2 + $0x17c] sm:$0xf]
    %v1139 = vld [vmem:[%s2 + $0x180] sm:$0xf]
    %v1140 = vld [vmem:[%s2 + $0x184] sm:$0xf]
    %v1141 = vld [vmem:[%s2 + $0x188] sm:$0xf]
    %v1142 = vld [vmem:[%s2 + $0x18c] sm:$0xf]
    %v1143 = vld [vmem:[%s2 + $0x190] sm:$0xf]
    %v1144 = vld [vmem:[%s2 + $0x194] sm:$0xf]
    %v1145 = vld [vmem:[%s2 + $0x198] sm:$0xf]
    %v1146 = vld [vmem:[%s2 + $0x19c] sm:$0xf]
    %v1147 = vld [vmem:[%s2 + $0x1a0] sm:$0xf]
    %v1148 = vld [vmem:[%s2 + $0x1a4] sm:$0xf]
    %v1149 = vld [vmem:[%s2 + $0x1a8] sm:$0xf]
    %v1150 = vld [vmem:[%s2 + $0x1ac] sm:$0xf]
    %v1151 = vld [vmem:[%s2 + $0x1b0] sm:$0xf]
    %v1152 = vld [vmem:[%s2 + $0x1b4] sm:$0xf]
    %v1153 = vld [vmem:[%s2 + $0x1b8] sm:$0xf]
    %v1154 = vld [vmem:[%s2 + $0x1bc] sm:$0xf]
    %v1155 = vld [vmem:[%s2 + $0x1c0] sm:$0xf]
    %v1156 = vld [vmem:[%s2 + $0x1c4] sm:$0xf]
    %v1157 = vld [vmem:[%s2 + $0x1c8] sm:$0xf]
    %v1158 = vld [vmem:[%s2 + $0x1cc] sm:$0xf]
    %v1159 = vld [vmem:[%s2 + $0x1d0] sm:$0xf]
    %v1160 = vld [vmem:[%s2 + $0x1d4] sm:$0xf]
    %v1161 = vld [vmem:[%s2 + $0x1d8] sm:$0xf]
    %v1162 = vld [vmem:[%s2 + $0x1dc] sm:$0xf]
    %v1163 = vld [vmem:[%s2 + $0x1e0] sm:$0xf]
    %v1164 = vld [vmem:[%s2 + $0x1e4] sm:$0xf]
    %v1165 = vld [vmem:[%s2 + $0x1e8] sm:$0xf]
    %v1166 = vld [vmem:[%s2 + $0x1ec] sm:$0xf]
    %v1167 = vld [vmem:[%s2 + $0x1f0] sm:$0xf]
    %v1168 = vld [vmem:[%s2 + $0x1f4] sm:$0xf]
    %v1169 = vld [vmem:[%s2 + $0x1f8] sm:$0xf]
    %v1170 = vld [vmem:[%s2 + $0x1fc] sm:$0xf]
    %v1171 = vld [vmem:[%s2 + $0x200] sm:$0xf]
    %v1172 = vld [vmem:[%s2 + $0x204] sm:$0xf]
    %v1173 = vld [vmem:[%s2 + $0x208] sm:$0xf]
    %v1174 = vld [vmem:[%s2 + $0x20c] sm:$0xf]
    %v1175 = vld [vmem:[%s2 + $0x210] sm:$0xf]
    %v1176 = vld [vmem:[%s2 + $0x214] sm:$0xf]
    %v1177 = vld [vmem:[%s2 + $0x218] sm:$0xf]
    %v1178 = vld [vmem:[%s2 + $0x21c] sm:$0xf]
    %v1179 = vld [vmem:[%s2 + $0x220] sm:$0xf]
    %v1180 = vld [vmem:[%s2 + $0x224] sm:$0xf]
    %v1181 = vld [vmem:[%s2 + $0x228] sm:$0xf]
    %v1182 = vld [vmem:[%s2 + $0x22c] sm:$0xf]
    %v1183 = vld [vmem:[%s2 + $0x230] sm:$0xf]
    %v1184 = vld [vmem:[%s2 + $0x234] sm:$0xf]
    %v1185 = vld [vmem:[%s2 + $0x238] sm:$0xf]
    %v1186 = vld [vmem:[%s2 + $0x23c] sm:$0xf]
    %v1187 = vld [vmem:[%s2 + $0x240] sm:$0xf]
    %v1188 = vld [vmem:[%s2 + $0x244] sm:$0xf]
    %v1189 = vld [vmem:[%s2 + $0x248] sm:$0xf]
    %v1190 = vld [vmem:[%s2 + $0x24c] sm:$0xf]
    %v1191 = vld [vmem:[%s2 + $0x250] sm:$0xf]
    %v1192 = vld [vmem:[%s2 + $0x254] sm:$0xf]
    %v1193 = vld [vmem:[%s2 + $0x258] sm:$0xf]
    %v1194 = vld [vmem:[%s2 + $0x25c] sm:$0xf]
    %v1195 = vld [vmem:[%s2 + $0x260] sm:$0xf]
    %v1196 = vld [vmem:[%s2 + $0x264] sm:$0xf]
    %v1197 = vld [vmem:[%s2 + $0x268] sm:$0xf]
    %v1198 = vld [vmem:[%s2 + $0x26c] sm:$0xf]
    %v1199 = vld [vmem:[%s2 + $0x270] sm:$0xf]
    %v1200 = vld [vmem:[%s2 + $0x274] sm:$0xf]
    %v1201 = vld [vmem:[%s2 + $0x278] sm:$0xf]
    %v1202 = vld [vmem:[%s2 + $0x27c] sm:$0xf]
    %v1203 = vld [vmem:[%s3] sm:$0x1]
    %v1205 = vlaneseq
    %v1206 = vshrl.u32 %v1205, 7
    %v1207 = vsub.s32 0, %v1206
    %v1208 = vrot.slane %v1203, %v1207
    %v1370 = vunpack.c.l.b16 %v1043
    %v1371 = vunpack.c.l.b16 %v1044
    %v1372 = vunpack.c.l.b16 %v1045
    %v1373 = vunpack.c.l.b16 %v1046
    %v1374 = vunpack.c.l.b16 %v1047
    %v1375 = vunpack.c.l.b16 %v1048
    %v1376 = vunpack.c.l.b16 %v1049
    %v1377 = vunpack.c.l.b16 %v1050
    %v1378 = vunpack.c.l.b16 %v1051
    %v1379 = vunpack.c.l.b16 %v1052
    %v1380 = vunpack.c.l.b16 %v1053
    %v1381 = vunpack.c.l.b16 %v1054
    %v1382 = vunpack.c.l.b16 %v1055
    %v1383 = vunpack.c.l.b16 %v1056
    %v1384 = vunpack.c.l.b16 %v1057
    %v1385 = vunpack.c.l.b16 %v1058
    %v1386 = vunpack.c.l.b16 %v1059
    %v1387 = vunpack.c.l.b16 %v1060
    %v1388 = vunpack.c.l.b16 %v1061
    %v1389 = vunpack.c.l.b16 %v1062
    %v1390 = vunpack.c.l.b16 %v1063
    %v1391 = vunpack.c.l.b16 %v1064
    %v1392 = vunpack.c.l.b16 %v1065
    %v1393 = vunpack.c.l.b16 %v1066
    %v1394 = vunpack.c.l.b16 %v1067
    %v1395 = vunpack.c.l.b16 %v1068
    %v1396 = vunpack.c.l.b16 %v1069
    %v1397 = vunpack.c.l.b16 %v1070
    %v1398 = vunpack.c.l.b16 %v1071
    %v1399 = vunpack.c.l.b16 %v1072
    %v1400 = vunpack.c.l.b16 %v1073
    %v1401 = vunpack.c.l.b16 %v1074
    %v1402 = vunpack.c.l.b16 %v1075
    %v1403 = vunpack.c.l.b16 %v1076
    %v1404 = vunpack.c.l.b16 %v1077
    %v1405 = vunpack.c.l.b16 %v1078
    %v1406 = vunpack.c.l.b16 %v1079
    %v1407 = vunpack.c.l.b16 %v1080
    %v1408 = vunpack.c.l.b16 %v1081
    %v1409 = vunpack.c.l.b16 %v1082
    %v1410 = vunpack.c.l.b16 %v1083
    %v1411 = vunpack.c.l.b16 %v1084
    %v1412 = vunpack.c.l.b16 %v1085
    %v1413 = vunpack.c.l.b16 %v1086
    %v1414 = vunpack.c.l.b16 %v1087
    %v1415 = vunpack.c.l.b16 %v1088
    %v1416 = vunpack.c.l.b16 %v1089
    %v1417 = vunpack.c.l.b16 %v1090
    %v1418 = vunpack.c.l.b16 %v1091
    %v1419 = vunpack.c.l.b16 %v1092
    %v1420 = vunpack.c.l.b16 %v1093
    %v1421 = vunpack.c.l.b16 %v1094
    %v1422 = vunpack.c.l.b16 %v1095
    %v1423 = vunpack.c.l.b16 %v1096
    %v1424 = vunpack.c.l.b16 %v1097
    %v1425 = vunpack.c.l.b16 %v1098
    %v1426 = vunpack.c.l.b16 %v1099
    %v1427 = vunpack.c.l.b16 %v1100
    %v1428 = vunpack.c.l.b16 %v1101
    %v1429 = vunpack.c.l.b16 %v1102
    %v1430 = vunpack.c.l.b16 %v1103
    %v1431 = vunpack.c.l.b16 %v1104
    %v1432 = vunpack.c.l.b16 %v1105
    %v1433 = vunpack.c.l.b16 %v1106
    %v1434 = vunpack.c.l.b16 %v1107
    %v1435 = vunpack.c.l.b16 %v1108
    %v1436 = vunpack.c.l.b16 %v1109
    %v1437 = vunpack.c.l.b16 %v1110
    %v1438 = vunpack.c.l.b16 %v1111
    %v1439 = vunpack.c.l.b16 %v1112
    %v1440 = vunpack.c.l.b16 %v1113
    %v1441 = vunpack.c.l.b16 %v1114
    %v1442 = vunpack.c.l.b16 %v1115
    %v1443 = vunpack.c.l.b16 %v1116
    %v1444 = vunpack.c.l.b16 %v1117
    %v1445 = vunpack.c.l.b16 %v1118
    %v1446 = vunpack.c.l.b16 %v1119
    %v1447 = vunpack.c.l.b16 %v1120
    %v1448 = vunpack.c.l.b16 %v1121
    %v1449 = vunpack.c.l.b16 %v1122
    %v1450 = vunpack.c.l.b16 %v1123
    %v1451 = vunpack.c.l.b16 %v1124
    %v1452 = vunpack.c.l.b16 %v1125
    %v1453 = vunpack.c.l.b16 %v1126
    %v1454 = vunpack.c.l.b16 %v1127
    %v1455 = vunpack.c.l.b16 %v1128
    %v1456 = vunpack.c.l.b16 %v1129
    %v1457 = vunpack.c.l.b16 %v1130
    %v1458 = vunpack.c.l.b16 %v1131
    %v1459 = vunpack.c.l.b16 %v1132
    %v1460 = vunpack.c.l.b16 %v1133
    %v1461 = vunpack.c.l.b16 %v1134
    %v1462 = vunpack.c.l.b16 %v1135
    %v1463 = vunpack.c.l.b16 %v1136
    %v1464 = vunpack.c.l.b16 %v1137
    %v1465 = vunpack.c.l.b16 %v1138
    %v1466 = vunpack.c.l.b16 %v1139
    %v1467 = vunpack.c.l.b16 %v1140
    %v1468 = vunpack.c.l.b16 %v1141
    %v1469 = vunpack.c.l.b16 %v1142
    %v1470 = vunpack.c.l.b16 %v1143
    %v1471 = vunpack.c.l.b16 %v1144
    %v1472 = vunpack.c.l.b16 %v1145
    %v1473 = vunpack.c.l.b16 %v1146
    %v1474 = vunpack.c.l.b16 %v1147
    %v1475 = vunpack.c.l.b16 %v1148
    %v1476 = vunpack.c.l.b16 %v1149
    %v1477 = vunpack.c.l.b16 %v1150
    %v1478 = vunpack.c.l.b16 %v1151
    %v1479 = vunpack.c.l.b16 %v1152
    %v1480 = vunpack.c.l.b16 %v1153
    %v1481 = vunpack.c.l.b16 %v1154
    %v1482 = vunpack.c.l.b16 %v1155
    %v1483 = vunpack.c.l.b16 %v1156
    %v1484 = vunpack.c.l.b16 %v1157
    %v1485 = vunpack.c.l.b16 %v1158
    %v1486 = vunpack.c.l.b16 %v1159
    %v1487 = vunpack.c.l.b16 %v1160
    %v1488 = vunpack.c.l.b16 %v1161
    %v1489 = vunpack.c.l.b16 %v1162
    %v1490 = vunpack.c.l.b16 %v1163
    %v1491 = vunpack.c.l.b16 %v1164
    %v1492 = vunpack.c.l.b16 %v1165
    %v1493 = vunpack.c.l.b16 %v1166
    %v1494 = vunpack.c.l.b16 %v1167
    %v1495 = vunpack.c.l.b16 %v1168
    %v1496 = vunpack.c.l.b16 %v1169
    %v1497 = vunpack.c.l.b16 %v1170
    %v1498 = vunpack.c.l.b16 %v1171
    %v1499 = vunpack.c.l.b16 %v1172
    %v1500 = vunpack.c.l.b16 %v1173
    %v1501 = vunpack.c.l.b16 %v1174
    %v1502 = vunpack.c.l.b16 %v1175
    %v1503 = vunpack.c.l.b16 %v1176
    %v1504 = vunpack.c.l.b16 %v1177
    %v1505 = vunpack.c.l.b16 %v1178
    %v1506 = vunpack.c.l.b16 %v1179
    %v1507 = vunpack.c.l.b16 %v1180
    %v1508 = vunpack.c.l.b16 %v1181
    %v1509 = vunpack.c.l.b16 %v1182
    %v1510 = vunpack.c.l.b16 %v1183
    %v1511 = vunpack.c.l.b16 %v1184
    %v1512 = vunpack.c.l.b16 %v1185
    %v1513 = vunpack.c.l.b16 %v1186
    %v1514 = vunpack.c.l.b16 %v1187
    %v1515 = vunpack.c.l.b16 %v1188
    %v1516 = vunpack.c.l.b16 %v1189
    %v1517 = vunpack.c.l.b16 %v1190
    %v1518 = vunpack.c.l.b16 %v1191
    %v1519 = vunpack.c.l.b16 %v1192
    %v1520 = vunpack.c.l.b16 %v1193
    %v1521 = vunpack.c.l.b16 %v1194
    %v1522 = vunpack.c.l.b16 %v1195
    %v1523 = vunpack.c.l.b16 %v1196
    %v1524 = vunpack.c.l.b16 %v1197
    %v1525 = vunpack.c.l.b16 %v1198
    %v1526 = vunpack.c.l.b16 %v1199
    %v1527 = vunpack.c.l.b16 %v1200
    %v1528 = vunpack.c.l.b16 %v1201
    %v1529 = vunpack.c.l.b16 %v1202
    %v1530 = vpack.c.b16 %v1371, %v1370
    %v1531 = vpack.c.b16 %v1373, %v1372
    %v1532 = vpack.c.b16 %v1375, %v1374
    %v1533 = vpack.c.b16 %v1377, %v1376
    %v1534 = vpack.c.b16 %v1379, %v1378
    %v1535 = vpack.c.b16 %v1381, %v1380
    %v1536 = vpack.c.b16 %v1383, %v1382
    %v1537 = vpack.c.b16 %v1385, %v1384
    %v1538 = vpack.c.b16 %v1387, %v1386
    %v1539 = vpack.c.b16 %v1389, %v1388
    %v1540 = vpack.c.b16 %v1391, %v1390
    %v1541 = vpack.c.b16 %v1393, %v1392
    %v1542 = vpack.c.b16 %v1395, %v1394
    %v1543 = vpack.c.b16 %v1397, %v1396
    %v1544 = vpack.c.b16 %v1399, %v1398
    %v1545 = vpack.c.b16 %v1401, %v1400
    %v1546 = vpack.c.b16 %v1403, %v1402
    %v1547 = vpack.c.b16 %v1405, %v1404
    %v1548 = vpack.c.b16 %v1407, %v1406
    %v1549 = vpack.c.b16 %v1409, %v1408
    %v1550 = vpack.c.b16 %v1411, %v1410
    %v1551 = vpack.c.b16 %v1413, %v1412
    %v1552 = vpack.c.b16 %v1415, %v1414
    %v1553 = vpack.c.b16 %v1417, %v1416
    %v1554 = vpack.c.b16 %v1419, %v1418
    %v1555 = vpack.c.b16 %v1421, %v1420
    %v1556 = vpack.c.b16 %v1423, %v1422
    %v1557 = vpack.c.b16 %v1425, %v1424
    %v1558 = vpack.c.b16 %v1427, %v1426
    %v1559 = vpack.c.b16 %v1429, %v1428
    %v1560 = vpack.c.b16 %v1431, %v1430
    %v1561 = vpack.c.b16 %v1433, %v1432
    %v1562 = vpack.c.b16 %v1435, %v1434
    %v1563 = vpack.c.b16 %v1437, %v1436
    %v1564 = vpack.c.b16 %v1439, %v1438
    %v1565 = vpack.c.b16 %v1441, %v1440
    %v1566 = vpack.c.b16 %v1443, %v1442
    %v1567 = vpack.c.b16 %v1445, %v1444
    %v1568 = vpack.c.b16 %v1447, %v1446
    %v1569 = vpack.c.b16 %v1449, %v1448
    %v1570 = vpack.c.b16 %v1451, %v1450
    %v1571 = vpack.c.b16 %v1453, %v1452
    %v1572 = vpack.c.b16 %v1455, %v1454
    %v1573 = vpack.c.b16 %v1457, %v1456
    %v1574 = vpack.c.b16 %v1459, %v1458
    %v1575 = vpack.c.b16 %v1461, %v1460
    %v1576 = vpack.c.b16 %v1463, %v1462
    %v1577 = vpack.c.b16 %v1465, %v1464
    %v1578 = vpack.c.b16 %v1467, %v1466
    %v1579 = vpack.c.b16 %v1469, %v1468
    %v1580 = vpack.c.b16 %v1471, %v1470
    %v1581 = vpack.c.b16 %v1473, %v1472
    %v1582 = vpack.c.b16 %v1475, %v1474
    %v1583 = vpack.c.b16 %v1477, %v1476
    %v1584 = vpack.c.b16 %v1479, %v1478
    %v1585 = vpack.c.b16 %v1481, %v1480
    %v1586 = vpack.c.b16 %v1483, %v1482
    %v1587 = vpack.c.b16 %v1485, %v1484
    %v1588 = vpack.c.b16 %v1487, %v1486
    %v1589 = vpack.c.b16 %v1489, %v1488
    %v1590 = vpack.c.b16 %v1491, %v1490
    %v1591 = vpack.c.b16 %v1493, %v1492
    %v1592 = vpack.c.b16 %v1495, %v1494
    %v1593 = vpack.c.b16 %v1497, %v1496
    %v1594 = vpack.c.b16 %v1499, %v1498
    %v1595 = vpack.c.b16 %v1501, %v1500
    %v1596 = vpack.c.b16 %v1503, %v1502
    %v1597 = vpack.c.b16 %v1505, %v1504
    %v1598 = vpack.c.b16 %v1507, %v1506
    %v1599 = vpack.c.b16 %v1509, %v1508
    %v1600 = vpack.c.b16 %v1511, %v1510
    %v1601 = vpack.c.b16 %v1513, %v1512
    %v1602 = vpack.c.b16 %v1515, %v1514
    %v1603 = vpack.c.b16 %v1517, %v1516
    %v1604 = vpack.c.b16 %v1519, %v1518
    %v1605 = vpack.c.b16 %v1521, %v1520
    %v1606 = vpack.c.b16 %v1523, %v1522
    %v1607 = vpack.c.b16 %v1525, %v1524
    %v1608 = vpack.c.b16 %v1527, %v1526
    %v1609 = vpack.c.b16 %v1529, %v1528
    %1690 = vmatprep.subr.bf16.mxu0 0
    %1691 = vmatpush1.bf16.msra.mxu0 %v1537
    %1692 = vmatprep.subr.bf16.mxu0 0
    %1693 = vmatpush1.bf16.msra.mxu0 %v1536
    %1694 = vmatprep.subr.bf16.mxu0 0
    %1695 = vmatpush1.bf16.msra.mxu0 %v1535
    %1696 = vmatprep.subr.bf16.mxu0 0
    %1697 = vmatpush1.bf16.msra.mxu0 %v1534
    %1698 = vmatprep.subr.bf16.mxu0 0
    %1699 = vmatpush1.bf16.msra.mxu0 %v1533
    %1700 = vmatprep.subr.bf16.mxu0 0
    %1701 = vmatpush1.bf16.msra.mxu0 %v1532
    %1702 = vmatprep.subr.bf16.mxu0 0
    %1703 = vmatpush1.bf16.msra.mxu0 %v1531
    %1704 = vmatprep.subr.bf16.mxu0 0
    %1705 = vmatpush1.bf16.msra.mxu0 %v1530
    %1706 = vmatprep.subr.bf16.mxu0 0
    %1707 = vmatpush2.bf16.msra.mxu0 %v1545
    %1708 = vmatprep.subr.bf16.mxu0 0
    %1709 = vmatpush2.bf16.msra.mxu0 %v1544
    %1710 = vmatprep.subr.bf16.mxu0 0
    %1711 = vmatpush2.bf16.msra.mxu0 %v1543
    %1712 = vmatprep.subr.bf16.mxu0 0
    %1713 = vmatpush2.bf16.msra.mxu0 %v1542
    %1714 = vmatprep.subr.bf16.mxu0 0
    %1715 = vmatpush2.bf16.msra.mxu0 %v1541
    %1716 = vmatprep.subr.bf16.mxu0 0
    %1717 = vmatpush2.bf16.msra.mxu0 %v1540
    %1718 = vmatprep.subr.bf16.mxu0 0
    %1719 = vmatpush2.bf16.msra.mxu0 %v1539
    %1720 = vmatprep.subr.bf16.mxu0 0
    %1721 = vmatpush2.bf16.msra.mxu0 %v1538
    %1722 = vmatprep.mubr.bf16.mxu0 %v1034
    %1723 = vmatmul.mubr.bf16.gmra.mxu0 %v1033
    %v1724 = vpop.f32.mrf.mxu0
    %v1725 = vadd.f32 %v1208, %v1724
    %v1726 = vpop.f32.mrf.mxu0
    %v1727 = vpop.f32.mrf.mxu0
    %v1728 = vpop.f32.mrf.mxu0
    %1729 = vdwg.mxu0
    %1730 = vmatprep.subr.bf16.mxu0 0
    %1731 = vmatpush1.bf16.msra.mxu0 %v1553
    %1732 = vmatprep.subr.bf16.mxu0 0
    %1733 = vmatpush1.bf16.msra.mxu0 %v1552
    %1734 = vmatprep.subr.bf16.mxu0 0
    %1735 = vmatpush1.bf16.msra.mxu0 %v1551
    %1736 = vmatprep.subr.bf16.mxu0 0
    %1737 = vmatpush1.bf16.msra.mxu0 %v1550
    %1738 = vmatprep.subr.bf16.mxu0 0
    %1739 = vmatpush1.bf16.msra.mxu0 %v1549
    %1740 = vmatprep.subr.bf16.mxu0 0
    %1741 = vmatpush1.bf16.msra.mxu0 %v1548
    %1742 = vmatprep.subr.bf16.mxu0 0
    %1743 = vmatpush1.bf16.msra.mxu0 %v1547
    %1744 = vmatprep.subr.bf16.mxu0 0
    %1745 = vmatpush1.bf16.msra.mxu0 %v1546
    %1746 = vmatprep.subr.bf16.mxu0 0
    %1747 = vmatpush2.bf16.msra.mxu0 %v1561
    %1748 = vmatprep.subr.bf16.mxu0 0
    %1749 = vmatpush2.bf16.msra.mxu0 %v1560
    %1750 = vmatprep.subr.bf16.mxu0 0
    %1751 = vmatpush2.bf16.msra.mxu0 %v1559
    %1752 = vmatprep.subr.bf16.mxu0 0
    %1753 = vmatpush2.bf16.msra.mxu0 %v1558
    %1754 = vmatprep.subr.bf16.mxu0 0
    %1755 = vmatpush2.bf16.msra.mxu0 %v1557
    %1756 = vmatprep.subr.bf16.mxu0 0
    %1757 = vmatpush2.bf16.msra.mxu0 %v1556
    %1758 = vmatprep.subr.bf16.mxu0 0
    %1759 = vmatpush2.bf16.msra.mxu0 %v1555
    %1760 = vmatprep.subr.bf16.mxu0 0
    %1761 = vmatpush2.bf16.msra.mxu0 %v1554
    %1762 = vmatprep.mubr.bf16.mxu0 %v1036
    %1763 = vmatmul.mubr.bf16.gmra.mxu0 %v1035
    %v1764 = vpop.f32.mrf.mxu0
    %v1765 = vadd.f32 %v1725, %v1764
    %v1766 = vpop.f32.mrf.mxu0
    %v1767 = vpop.f32.mrf.mxu0
    %v1768 = vpop.f32.mrf.mxu0
    %1769 = vdwg.mxu0
    %1770 = vmatprep.subr.bf16.mxu0 0
    %1771 = vmatpush1.bf16.msra.mxu0 %v1569
    %1772 = vmatprep.subr.bf16.mxu0 0
    %1773 = vmatpush1.bf16.msra.mxu0 %v1568
    %1774 = vmatprep.subr.bf16.mxu0 0
    %1775 = vmatpush1.bf16.msra.mxu0 %v1567
    %1776 = vmatprep.subr.bf16.mxu0 0
    %1777 = vmatpush1.bf16.msra.mxu0 %v1566
    %1778 = vmatprep.subr.bf16.mxu0 0
    %1779 = vmatpush1.bf16.msra.mxu0 %v1565
    %1780 = vmatprep.subr.bf16.mxu0 0
    %1781 = vmatpush1.bf16.msra.mxu0 %v1564
    %1782 = vmatprep.subr.bf16.mxu0 0
    %1783 = vmatpush1.bf16.msra.mxu0 %v1563
    %1784 = vmatprep.subr.bf16.mxu0 0
    %1785 = vmatpush1.bf16.msra.mxu0 %v1562
    %1786 = vmatprep.subr.bf16.mxu0 0
    %1787 = vmatpush2.bf16.msra.mxu0 %v1577
    %1788 = vmatprep.subr.bf16.mxu0 0
    %1789 = vmatpush2.bf16.msra.mxu0 %v1576
    %1790 = vmatprep.subr.bf16.mxu0 0
    %1791 = vmatpush2.bf16.msra.mxu0 %v1575
    %1792 = vmatprep.subr.bf16.mxu0 0
    %1793 = vmatpush2.bf16.msra.mxu0 %v1574
    %1794 = vmatprep.subr.bf16.mxu0 0
    %1795 = vmatpush2.bf16.msra.mxu0 %v1573
    %1796 = vmatprep.subr.bf16.mxu0 0
    %1797 = vmatpush2.bf16.msra.mxu0 %v1572
    %1798 = vmatprep.subr.bf16.mxu0 0
    %1799 = vmatpush2.bf16.msra.mxu0 %v1571
    %1800 = vmatprep.subr.bf16.mxu0 0
    %1801 = vmatpush2.bf16.msra.mxu0 %v1570
    %1802 = vmatprep.mubr.bf16.mxu0 %v1038
    %1803 = vmatmul.mubr.bf16.gmra.mxu0 %v1037
    %v1804 = vpop.f32.mrf.mxu0
    %v1805 = vadd.f32 %v1765, %v1804
    %v1806 = vpop.f32.mrf.mxu0
    %v1807 = vpop.f32.mrf.mxu0
    %v1808 = vpop.f32.mrf.mxu0
    %1809 = vdwg.mxu0
    %1810 = vmatprep.subr.bf16.mxu0 0
    %1811 = vmatpush1.bf16.msra.mxu0 %v1585
    %1812 = vmatprep.subr.bf16.mxu0 0
    %1813 = vmatpush1.bf16.msra.mxu0 %v1584
    %1814 = vmatprep.subr.bf16.mxu0 0
    %1815 = vmatpush1.bf16.msra.mxu0 %v1583
    %1816 = vmatprep.subr.bf16.mxu0 0
    %1817 = vmatpush1.bf16.msra.mxu0 %v1582
    %1818 = vmatprep.subr.bf16.mxu0 0
    %1819 = vmatpush1.bf16.msra.mxu0 %v1581
    %1820 = vmatprep.subr.bf16.mxu0 0
    %1821 = vmatpush1.bf16.msra.mxu0 %v1580
    %1822 = vmatprep.subr.bf16.mxu0 0
    %1823 = vmatpush1.bf16.msra.mxu0 %v1579
    %1824 = vmatprep.subr.bf16.mxu0 0
    %1825 = vmatpush1.bf16.msra.mxu0 %v1578
    %1826 = vmatprep.subr.bf16.mxu0 0
    %1827 = vmatpush2.bf16.msra.mxu0 %v1593
    %1828 = vmatprep.subr.bf16.mxu0 0
    %1829 = vmatpush2.bf16.msra.mxu0 %v1592
    %1830 = vmatprep.subr.bf16.mxu0 0
    %1831 = vmatpush2.bf16.msra.mxu0 %v1591
    %1832 = vmatprep.subr.bf16.mxu0 0
    %1833 = vmatpush2.bf16.msra.mxu0 %v1590
    %1834 = vmatprep.subr.bf16.mxu0 0
    %1835 = vmatpush2.bf16.msra.mxu0 %v1589
    %1836 = vmatprep.subr.bf16.mxu0 0
    %1837 = vmatpush2.bf16.msra.mxu0 %v1588
    %1838 = vmatprep.subr.bf16.mxu0 0
    %1839 = vmatpush2.bf16.msra.mxu0 %v1587
    %1840 = vmatprep.subr.bf16.mxu0 0
    %1841 = vmatpush2.bf16.msra.mxu0 %v1586
    %1842 = vmatprep.mubr.bf16.mxu0 %v1040
    %1843 = vmatmul.mubr.bf16.gmra.mxu0 %v1039
    %v1844 = vpop.f32.mrf.mxu0
    %v1845 = vadd.f32 %v1805, %v1844
    %v1846 = vpop.f32.mrf.mxu0
    %v1847 = vpop.f32.mrf.mxu0
    %v1848 = vpop.f32.mrf.mxu0
    %1849 = vdwg.mxu0
    %1850 = vmatprep.subr.bf16.mxu0 0
    %1851 = vmatpush1.bf16.msra.mxu0 %v1601
    %1852 = vmatprep.subr.bf16.mxu0 0
    %1853 = vmatpush1.bf16.msra.mxu0 %v1600
    %1854 = vmatprep.subr.bf16.mxu0 0
    %1855 = vmatpush1.bf16.msra.mxu0 %v1599
    %1856 = vmatprep.subr.bf16.mxu0 0
    %1857 = vmatpush1.bf16.msra.mxu0 %v1598
    %1858 = vmatprep.subr.bf16.mxu0 0
    %1859 = vmatpush1.bf16.msra.mxu0 %v1597
    %1860 = vmatprep.subr.bf16.mxu0 0
    %1861 = vmatpush1.bf16.msra.mxu0 %v1596
    %1862 = vmatprep.subr.bf16.mxu0 0
    %1863 = vmatpush1.bf16.msra.mxu0 %v1595
    %1864 = vmatprep.subr.bf16.mxu0 0
    %1865 = vmatpush1.bf16.msra.mxu0 %v1594
    %1866 = vmatprep.subr.bf16.mxu0 0
    %1867 = vmatpush2.bf16.msra.mxu0 %v1609
    %1868 = vmatprep.subr.bf16.mxu0 0
    %1869 = vmatpush2.bf16.msra.mxu0 %v1608
    %1870 = vmatprep.subr.bf16.mxu0 0
    %1871 = vmatpush2.bf16.msra.mxu0 %v1607
    %1872 = vmatprep.subr.bf16.mxu0 0
    %1873 = vmatpush2.bf16.msra.mxu0 %v1606
    %1874 = vmatprep.subr.bf16.mxu0 0
    %1875 = vmatpush2.bf16.msra.mxu0 %v1605
    %1876 = vmatprep.subr.bf16.mxu0 0
    %1877 = vmatpush2.bf16.msra.mxu0 %v1604
    %1878 = vmatprep.subr.bf16.mxu0 0
    %1879 = vmatpush2.bf16.msra.mxu0 %v1603
    %1880 = vmatprep.subr.bf16.mxu0 0
    %1881 = vmatpush2.bf16.msra.mxu0 %v1602
    %1882 = vmatprep.mubr.bf16.mxu0 %v1042
    %1883 = vmatmul.mubr.bf16.gmra.mxu0 %v1041
    %v1884 = vpop.f32.mrf.mxu0
    %v1885 = vadd.f32 %v1845, %v1884
    %v1886 = vpop.f32.mrf.mxu0
    %v1887 = vpop.f32.mrf.mxu0
    %v1888 = vpop.f32.mrf.mxu0
    %1889 = vdwg.mxu0
    %v1890 = vmax.f32 %v1885, 0.0
    %v1891 = vpack.c.bf16 %v1890, %v1890
    %v1892 = vld [vmem:[%s4] sm:$0xf]
    %v1893 = vld [vmem:[%s4 + $0x4] sm:$0xf]
    %v1894 = vld [vmem:[%s4 + $0x8] sm:$0xf]
    %v1895 = vld [vmem:[%s4 + $0xc] sm:$0xf]
    %v1896 = vld [vmem:[%s4 + $0x10] sm:$0xf]
    %v1897 = vld [vmem:[%s4 + $0x14] sm:$0xf]
    %v1898 = vld [vmem:[%s4 + $0x18] sm:$0xf]
    %v1899 = vld [vmem:[%s4 + $0x1c] sm:$0xf]
    %v1900 = vld [vmem:[%s4 + $0x20] sm:$0xf]
    %v1901 = vld [vmem:[%s4 + $0x24] sm:$0xf]
    %v1902 = vld [vmem:[%s4 + $0x28] sm:$0xf]
    %v1903 = vld [vmem:[%s4 + $0x2c] sm:$0xf]
    %v1904 = vld [vmem:[%s4 + $0x30] sm:$0xf]
    %v1905 = vld [vmem:[%s4 + $0x34] sm:$0xf]
    %v1906 = vld [vmem:[%s4 + $0x38] sm:$0xf]
    %v1907 = vld [vmem:[%s4 + $0x3c] sm:$0xf]
    %v1908 = vld [vmem:[%s5] sm:$0x1]
    %v1910 = vlaneseq
    %v1911 = vshrl.u32 %v1910, 7
    %v1912 = vsub.s32 0, %v1911
    %v1913 = vrot.slane %v1908, %v1912
    %v1931 = vunpack.c.l.b16 %v1892
    %v1932 = vunpack.c.l.b16 %v1893
    %v1933 = vunpack.c.l.b16 %v1894
    %v1934 = vunpack.c.l.b16 %v1895
    %v1935 = vunpack.c.l.b16 %v1896
    %v1936 = vunpack.c.l.b16 %v1897
    %v1937 = vunpack.c.l.b16 %v1898
    %v1938 = vunpack.c.l.b16 %v1899
    %v1939 = vunpack.c.l.b16 %v1900
    %v1940 = vunpack.c.l.b16 %v1901
    %v1941 = vunpack.c.l.b16 %v1902
    %v1942 = vunpack.c.l.b16 %v1903
    %v1943 = vunpack.c.l.b16 %v1904
    %v1944 = vunpack.c.l.b16 %v1905
    %v1945 = vunpack.c.l.b16 %v1906
    %v1946 = vunpack.c.l.b16 %v1907
    %v1947 = vpack.c.b16 %v1932, %v1931
    %v1948 = vpack.c.b16 %v1934, %v1933
    %v1949 = vpack.c.b16 %v1936, %v1935
    %v1950 = vpack.c.b16 %v1938, %v1937
    %v1951 = vpack.c.b16 %v1940, %v1939
    %v1952 = vpack.c.b16 %v1942, %v1941
    %v1953 = vpack.c.b16 %v1944, %v1943
    %v1954 = vpack.c.b16 %v1946, %v1945
    %1963 = vmatprep.subr.bf16.mxu0 0
    %1964 = vmatpush1.bf16.msra.mxu0 %v1954
    %1965 = vmatprep.subr.bf16.mxu0 0
    %1966 = vmatpush1.bf16.msra.mxu0 %v1953
    %1967 = vmatprep.subr.bf16.mxu0 0
    %1968 = vmatpush1.bf16.msra.mxu0 %v1952
    %1969 = vmatprep.subr.bf16.mxu0 0
    %1970 = vmatpush1.bf16.msra.mxu0 %v1951
    %1971 = vmatprep.subr.bf16.mxu0 0
    %1972 = vmatpush1.bf16.msra.mxu0 %v1950
    %1973 = vmatprep.subr.bf16.mxu0 0
    %1974 = vmatpush1.bf16.msra.mxu0 %v1949
    %1975 = vmatprep.subr.bf16.mxu0 0
    %1976 = vmatpush1.bf16.msra.mxu0 %v1948
    %1977 = vmatprep.subr.bf16.mxu0 0
    %1978 = vmatpush1.bf16.msra.mxu0 %v1947
    %1979 = vmatprep.subr.bf16.mxu0 0
    %1980 = vmatpush2.bf16.msra.mxu0 0
    %1981 = vmatprep.subr.bf16.mxu0 0
    %1982 = vmatpush2.bf16.msra.mxu0 0
    %1983 = vmatprep.subr.bf16.mxu0 0
    %1984 = vmatpush2.bf16.msra.mxu0 0
    %1985 = vmatprep.subr.bf16.mxu0 0
    %1986 = vmatpush2.bf16.msra.mxu0 0
    %1987 = vmatprep.subr.bf16.mxu0 0
    %1988 = vmatpush2.bf16.msra.mxu0 0
    %1989 = vmatprep.subr.bf16.mxu0 0
    %1990 = vmatpush2.bf16.msra.mxu0 0
    %1991 = vmatprep.subr.bf16.mxu0 0
    %1992 = vmatpush2.bf16.msra.mxu0 0
    %1993 = vmatprep.subr.bf16.mxu0 0
    %1994 = vmatpush2.bf16.msra.mxu0 0
    %1995 = vmatprep.mubr.bf16.mxu0 0
    %1996 = vmatmul.mubr.bf16.gmra.mxu0 %v1891
    %v1997 = vpop.f32.mrf.mxu0
    %v1998 = vadd.f32 %v1913, %v1997
    %v1999 = vpop.f32.mrf.mxu0
    %v2000 = vpop.f32.mrf.mxu0
    %v2001 = vpop.f32.mrf.mxu0
    %2002 = vdwg.mxu0
    %v2003 = vmax.f32 %v1998, 0.0
    %v2004 = vpack.c.bf16 %v2003, %v2003
    %v2005 = vld [vmem:[%s6] sm:$0xf]
    %v2006 = vld [vmem:[%s6 + $0x4] sm:$0xf]
    %v2007 = vld [vmem:[%s6 + $0x8] sm:$0xf]
    %v2008 = vld [vmem:[%s6 + $0xc] sm:$0xf]
    %v2009 = vld [vmem:[%s6 + $0x10] sm:$0xf]
    %v2010 = vld [vmem:[%s6 + $0x14] sm:$0xf]
    %v2011 = vld [vmem:[%s6 + $0x18] sm:$0xf]
    %v2012 = vld [vmem:[%s6 + $0x1c] sm:$0xf]
    %v2013 = vld [vmem:[%s6 + $0x20] sm:$0xf]
    %v2014 = vld [vmem:[%s6 + $0x24] sm:$0xf]
    %v2015 = vld [vmem:[%s6 + $0x28] sm:$0xf]
    %v2016 = vld [vmem:[%s6 + $0x2c] sm:$0xf]
    %v2017 = vld [vmem:[%s6 + $0x30] sm:$0xf]
    %v2018 = vld [vmem:[%s6 + $0x34] sm:$0xf]
    %v2019 = vld [vmem:[%s6 + $0x38] sm:$0xf]
    %v2020 = vld [vmem:[%s6 + $0x3c] sm:$0xf]
    %v2021 = vld [vmem:[%s7] sm:$0x1]
    %v2023 = vlaneseq
    %v2024 = vshrl.u32 %v2023, 7
    %v2025 = vsub.s32 0, %v2024
    %v2026 = vrot.slane %v2021, %v2025
    %v2044 = vunpack.c.l.b16 %v2005
    %v2045 = vunpack.c.l.b16 %v2006
    %v2046 = vunpack.c.l.b16 %v2007
    %v2047 = vunpack.c.l.b16 %v2008
    %v2048 = vunpack.c.l.b16 %v2009
    %v2049 = vunpack.c.l.b16 %v2010
    %v2050 = vunpack.c.l.b16 %v2011
    %v2051 = vunpack.c.l.b16 %v2012
    %v2052 = vunpack.c.l.b16 %v2013
    %v2053 = vunpack.c.l.b16 %v2014
    %v2054 = vunpack.c.l.b16 %v2015
    %v2055 = vunpack.c.l.b16 %v2016
    %v2056 = vunpack.c.l.b16 %v2017
    %v2057 = vunpack.c.l.b16 %v2018
    %v2058 = vunpack.c.l.b16 %v2019
    %v2059 = vunpack.c.l.b16 %v2020
    %v2060 = vpack.c.b16 %v2045, %v2044
    %v2061 = vpack.c.b16 %v2047, %v2046
    %v2062 = vpack.c.b16 %v2049, %v2048
    %v2063 = vpack.c.b16 %v2051, %v2050
    %v2064 = vpack.c.b16 %v2053, %v2052
    %v2065 = vpack.c.b16 %v2055, %v2054
    %v2066 = vpack.c.b16 %v2057, %v2056
    %v2067 = vpack.c.b16 %v2059, %v2058
    %2076 = vmatprep.subr.bf16.mxu0 0
    %2077 = vmatpush1.bf16.msra.mxu0 %v2067
    %2078 = vmatprep.subr.bf16.mxu0 0
    %2079 = vmatpush1.bf16.msra.mxu0 %v2066
    %2080 = vmatprep.subr.bf16.mxu0 0
    %2081 = vmatpush1.bf16.msra.mxu0 %v2065
    %2082 = vmatprep.subr.bf16.mxu0 0
    %2083 = vmatpush1.bf16.msra.mxu0 %v2064
    %2084 = vmatprep.subr.bf16.mxu0 0
    %2085 = vmatpush1.bf16.msra.mxu0 %v2063
    %2086 = vmatprep.subr.bf16.mxu0 0
    %2087 = vmatpush1.bf16.msra.mxu0 %v2062
    %2088 = vmatprep.subr.bf16.mxu0 0
    %2089 = vmatpush1.bf16.msra.mxu0 %v2061
    %2090 = vmatprep.subr.bf16.mxu0 0
    %2091 = vmatpush1.bf16.msra.mxu0 %v2060
    %2092 = vmatprep.subr.bf16.mxu0 0
    %2093 = vmatpush2.bf16.msra.mxu0 0
    %2094 = vmatprep.subr.bf16.mxu0 0
    %2095 = vmatpush2.bf16.msra.mxu0 0
    %2096 = vmatprep.subr.bf16.mxu0 0
    %2097 = vmatpush2.bf16.msra.mxu0 0
    %2098 = vmatprep.subr.bf16.mxu0 0
    %2099 = vmatpush2.bf16.msra.mxu0 0
    %2100 = vmatprep.subr.bf16.mxu0 0
    %2101 = vmatpush2.bf16.msra.mxu0 0
    %2102 = vmatprep.subr.bf16.mxu0 0
    %2103 = vmatpush2.bf16.msra.mxu0 0
    %2104 = vmatprep.subr.bf16.mxu0 0
    %2105 = vmatpush2.bf16.msra.mxu0 0
    %2106 = vmatprep.subr.bf16.mxu0 0
    %2107 = vmatpush2.bf16.msra.mxu0 0
    %2108 = vmatprep.mubr.bf16.mxu0 0
    %2109 = vmatmul.mubr.bf16.gmra.mxu0 %v2004
    %v2110 = vpop.f32.mrf.mxu0
    %v2111 = vadd.f32 %v2026, %v2110
    %v2112 = vpop.f32.mrf.mxu0
    %v2113 = vpop.f32.mrf.mxu0
    %v2114 = vpop.f32.mrf.mxu0
    %2115 = vdwg.mxu0
    %2116 = vst [vmem:[%s8] sm:$0xff] %v2111
    // Predicated region
    $region38: #{cnn_forward_pallas_hbw.1} parent=1 // pred_check
      _
    $region39: #{cnn_forward_pallas_hbw.1} parent=1 // pred_check_branch
      %2118 = sbr.rel (0) target = $region41
    $region40: #{cnn_forward_pallas_hbw.1} parent=1 // pred_region
      _
    $region41: #{cnn_forward_pallas_hbw.1} parent=1 // pred_fallthru
      _
    // Predicated region
    $region42: #{cnn_forward_pallas_hbw.1} parent=1 // pred_check
      _
    $region43: #{cnn_forward_pallas_hbw.1} parent=1 // pred_check_branch
      %2120 = sbr.rel (0) target = $region45
    $region44: #{cnn_forward_pallas_hbw.1} parent=1 // pred_region
      _
    $region45: #{cnn_forward_pallas_hbw.1} parent=1 // pred_fallthru
      _
    %2121 = vsyncpa [#allocation3], 1

</llo_original>
